<compile_context>
chip_gen: v6e
topology: v6e:2x2x1
jax: 0.10.0
libtpu: 0.0.40
codegen_flags: <defaults>
</compile_context>

<pallas_src>
import functools

import jax
import jax.numpy as jnp
from jax import lax
from jax.experimental import pallas as pl
from jax.experimental.pallas import tpu as pltpu


def _round_up(x, m):
    return (x + m - 1) // m * m


def _num_tensorcores():
    """Best-effort TensorCore count of the local chip (2 on v7x/v4 megacore)."""
    try:
        dev = jax.devices()[0]
        n = getattr(dev, "num_cores", None)
        if n is not None:
            return int(n)
        kind = str(getattr(dev, "device_kind", "")).lower()
        if "v7" in kind or "v4" in kind:
            return 2
    except Exception:  # pragma: no cover - defensive
        pass
    return 1


def _bytes(shape, dtype):
    n = 1
    for s in shape:
        n *= int(s)
    return n * jnp.dtype(dtype).itemsize


def _vmem_limit(resident_bytes):
    # double-buffering + compiler scratch headroom; floor above v5e's 16 MiB
    # default, ceiling below v7x's 64 MiB physical VMEM.
    return int(min(max(2 * resident_bytes + (4 << 20), 32 << 20), 48 << 20))


def _pick_time_chunk(T):
    for cand in (32, 16, 8):
        if T % cand == 0:
            return cand
    return T  # full-length fallback (block == full dim is always legal)


# ---------------------------------------------------------------------------
# Kernel 1: fused 3x3 conv (pad=1) + bias + leaky_relu + mean over H.
#   Conv is computed with 9*Cin shifted reads of the padded image and VPU
#   multiply-accumulates (first conv layers have tiny Cin, so the MXU would
#   waste almost its entire contraction depth here).  The f32 conv activation
#   never leaves VMEM; only the (B, W, C) bf16 feature sequence goes to HBM.
# ---------------------------------------------------------------------------
def _conv_act_hmean_kernel(x_ref, w_ref, b_ref, o_ref, *, Hh, Ww, Cin, slope):
    Cp = w_ref.shape[-1]
    x = x_ref[0]                                           # (Hh+2, Ww+2, Cin)
    acc = jnp.zeros((Hh, Ww, Cp), jnp.float32)
    for di in range(3):
        for dj in range(3):
            for ci in range(Cin):
                xs = x[di:di + Hh, dj:dj + Ww, ci:ci + 1]  # (Hh, Ww, 1)
                row = (di * 3 + dj) * Cin + ci
                wt = w_ref[row:row + 1, :]                 # (1, Cp)
                acc = acc + xs.astype(jnp.float32) * wt
    acc = acc + b_ref[...]
    acc = jnp.where(acc >= 0, acc, slope * acc)            # leaky_relu
    o_ref[0] = jnp.mean(acc, axis=0).astype(o_ref.dtype)   # collapse H -> (Ww, Cp)


def conv_leaky_hmean(x_nhwc, conv_w, conv_b, negative_slope=0.01):
    B, Hh, Ww, Cin = x_nhwc.shape
    Cp = conv_w.shape[-1]
    xp = jnp.pad(x_nhwc, ((0, 0), (1, 1), (1, 1), (0, 0)))
    w2d = conv_w.reshape(9 * Cin, Cp)
    b2d = conv_b.reshape(1, Cp)
    resident = (_bytes((1, Hh + 2, Ww + 2, Cin), xp.dtype)
                + _bytes(w2d.shape, w2d.dtype) + _bytes(b2d.shape, b2d.dtype)
                + _bytes((1, Ww, Cp), jnp.bfloat16))
    kernel = functools.partial(_conv_act_hmean_kernel, Hh=Hh, Ww=Ww, Cin=Cin,
                               slope=negative_slope)
    return pl.pallas_call(
        kernel,
        out_shape=jax.ShapeDtypeStruct((B, Ww, Cp), jnp.bfloat16),
        grid=(B,),
        in_specs=[
            pl.BlockSpec((1, Hh + 2, Ww + 2, Cin), lambda b: (b, 0, 0, 0)),
            pl.BlockSpec((9 * Cin, Cp), lambda b: (0, 0)),
            pl.BlockSpec((1, Cp), lambda b: (0, 0)),
        ],
        out_specs=pl.BlockSpec((1, Ww, Cp), lambda b: (b, 0, 0)),
        compiler_params=pltpu.CompilerParams(
            dimension_semantics=("parallel",),
            vmem_limit_bytes=_vmem_limit(resident)),
    )(xp, w2d, b2d)


# ---------------------------------------------------------------------------
# Kernel 2: GRU encoder, time-chunked, with the input projection fused in.
#   feat:  (B, T, C) bf16          W_ih: (C, 3H) bf16   W_hh: (H, 3H) bf16
#   out:   (T, B, H) bf16 (time-major, exactly what the decoder reads)
#   h lives in VMEM scratch and carries across time chunks.
# ---------------------------------------------------------------------------
def _gru_encoder_kernel(feat_ref, wih_ref, bih_ref, whh_ref, bhh_ref,
                        out_ref, h_scr, *, tc):
    H = h_scr.shape[-1]

    @pl.when(pl.program_id(1) == 0)
    def _():
        h_scr[...] = jnp.zeros_like(h_scr)

    h = h_scr[...]                                         # (Bblk, H) f32
    chunk = feat_ref[...]                                  # (Bblk, tc, C) bf16
    wih = wih_ref[...]
    whh = whh_ref[...]
    bih = bih_ref[...]
    bhh = bhh_ref[...]
    for i in range(tc):                                    # static unroll
        x_i = chunk[:, i, :]                               # (Bblk, C)
        gi = jnp.dot(x_i, wih, preferred_element_type=jnp.float32) + bih
        gh = jnp.dot(h.astype(jnp.bfloat16), whh,
                     preferred_element_type=jnp.float32) + bhh
        r = jax.nn.sigmoid(gi[:, :H] + gh[:, :H])
        z = jax.nn.sigmoid(gi[:, H:2 * H] + gh[:, H:2 * H])
        n = jnp.tanh(gi[:, 2 * H:] + r * gh[:, 2 * H:])
        h = (1.0 - z) * n + z * h
        out_ref[i] = h.astype(out_ref.dtype)
    h_scr[...] = h


def gru_encoder(feat_btc, wih, bih, whh, bhh, hidden, bsplit):
    B, T, C = feat_btc.shape
    Bblk = B // bsplit
    tc = _pick_time_chunk(T)
    H3 = 3 * hidden
    resident = (_bytes((Bblk, tc, C), jnp.bfloat16)
                + _bytes((C, H3), jnp.bfloat16) + _bytes((1, H3), jnp.float32)
                + _bytes((hidden, H3), jnp.bfloat16) + _bytes((1, H3), jnp.float32)
                + _bytes((tc, Bblk, hidden), jnp.bfloat16)
                + _bytes((Bblk, hidden), jnp.float32))
    kernel = functools.partial(_gru_encoder_kernel, tc=tc)
    return pl.pallas_call(
        kernel,
        out_shape=jax.ShapeDtypeStruct((T, B, hidden), jnp.bfloat16),
        grid=(bsplit, T // tc),
        in_specs=[
            pl.BlockSpec((Bblk, tc, C), lambda b, t: (b, t, 0)),
            pl.BlockSpec((C, H3), lambda b, t: (0, 0)),
            pl.BlockSpec((1, H3), lambda b, t: (0, 0)),
            pl.BlockSpec((hidden, H3), lambda b, t: (0, 0)),
            pl.BlockSpec((1, H3), lambda b, t: (0, 0)),
        ],
        out_specs=pl.BlockSpec((tc, Bblk, hidden), lambda b, t: (t, b, 0)),
        scratch_shapes=[pltpu.VMEM((Bblk, hidden), jnp.float32)],
        compiler_params=pltpu.CompilerParams(
            dimension_semantics=("parallel", "arbitrary"),
            vmem_limit_bytes=_vmem_limit(resident)),
    )(feat_btc, wih, bih, whh, bhh)


# ---------------------------------------------------------------------------
# Kernel 3: greedy decoder step (VPU attention + GRU cell + prediction +
#           argmax feedback); one grid step per output token.
#   enc: (T, B, H) bf16   weights bf16 (f32 MXU accumulation), biases f32
#   out: (B, L1*Vp) f32, one lane-dense (Bblk, Vp) block per (batch, step).
# ---------------------------------------------------------------------------
def _decoder_kernel(enc_ref, emb_ref, w_in_ref, whh_ref, bih_ref, bhh_ref,
                    wpred_ref, bpred_ref, out_ref, h_scr, tok_scr):
    T, Bblk, H = enc_ref.shape
    Vp = emb_ref.shape[0]
    iota_v = lax.broadcasted_iota(jnp.int32, (Bblk, Vp), 1)

    @pl.when(pl.program_id(1) == 0)
    def _():
        h_scr[...] = jnp.zeros_like(h_scr)
        # initial token id 0 for every batch element -> one-hot column 0
        tok_scr[...] = (iota_v == 0).astype(tok_scr.dtype)

    # TODO(synk): replace the one-hot @ embedding matmul with an SMEM-index
    # row gather for large vocabularies (fine while Vp stays a few hundred).
    onehot = tok_scr[...]                                       # (Bblk, Vp) bf16
    emb = jnp.dot(onehot, emb_ref[...],
                  preferred_element_type=jnp.float32)           # (Bblk, H) f32
    h = h_scr[...]                                              # (Bblk, H) f32
    enc = enc_ref[...].astype(jnp.float32)                      # (T, Bblk, H)

    # single-query dot-product attention on VPU/XLU (q=1 would waste the MXU)
    scores = jnp.sum(enc * h[None, :, :], axis=-1)              # (T, Bblk)
    m = jnp.max(scores, axis=0, keepdims=True)
    w = jnp.exp(scores - m)
    attn = w * pl.reciprocal(jnp.sum(w, axis=0, keepdims=True), approx=True)
    ctx = jnp.sum(attn[:, :, None] * enc, axis=0)               # (Bblk, H)

    # fused GRU gates (bf16 operands, f32 MXU accumulation)
    gin = jnp.concatenate([emb, ctx], axis=-1).astype(jnp.bfloat16)
    gi = jnp.dot(gin, w_in_ref[...],
                 preferred_element_type=jnp.float32) + bih_ref[...]
    gh = jnp.dot(h.astype(jnp.bfloat16), whh_ref[...],
                 preferred_element_type=jnp.float32) + bhh_ref[...]
    r = jax.nn.sigmoid(gi[:, :H] + gh[:, :H])
    z = jax.nn.sigmoid(gi[:, H:2 * H] + gh[:, H:2 * H])
    n = jnp.tanh(gi[:, 2 * H:] + r * gh[:, 2 * H:])
    h_new = (1.0 - z) * n + z * h
    h_scr[...] = h_new

    # prediction head (padded vocab columns carry a -1e30 bias)
    logits = jnp.dot(h_new.astype(jnp.bfloat16), wpred_ref[...],
                     preferred_element_type=jnp.float32) + bpred_ref[...]
    out_ref[...] = logits                                       # (Bblk, Vp)

    # greedy argmax (first max index, like torch .max(1)[1]) -> next one-hot
    mx = jnp.max(logits, axis=-1, keepdims=True)
    idx = jnp.min(jnp.where(logits >= mx, iota_v, Vp),
                  axis=-1, keepdims=True)                       # (Bblk, 1)
    tok_scr[...] = (iota_v == idx).astype(tok_scr.dtype)


def greedy_decode(enc_tbH, emb, w_in, whh, bih, bhh, wpred, bpred,
                  max_len, vocab, bsplit):
    T, B, H = enc_tbH.shape
    Vp = emb.shape[0]
    L1 = max_len - 1
    Bblk = B // bsplit
    resident = (_bytes((T, Bblk, H), jnp.bfloat16)
                + _bytes((Vp, H), jnp.bfloat16)
                + _bytes((2 * H, 3 * H), jnp.bfloat16)
                + _bytes((H, 3 * H), jnp.bfloat16)
                + 2 * _bytes((1, 3 * H), jnp.float32)
                + _bytes((H, Vp), jnp.bfloat16) + _bytes((1, Vp), jnp.float32)
                + _bytes((Bblk, Vp), jnp.float32)                # out block
                + _bytes((Bblk, H), jnp.float32)                 # h scratch
                + _bytes((Bblk, Vp), jnp.bfloat16))              # token scratch
    # TODO(synk): mark the grid-invariant weight BlockSpecs single-buffered
    # (pipeline_mode=pl.Buffered(1)) once that path is exercised, to further
    # shrink the v7x VMEM footprint at very large vocab sizes.
    out = pl.pallas_call(
        _decoder_kernel,
        out_shape=jax.ShapeDtypeStruct((B, L1 * Vp), jnp.float32),
        grid=(bsplit, L1),
        in_specs=[
            pl.BlockSpec((T, Bblk, H), lambda b, s: (0, b, 0)),
            pl.BlockSpec((Vp, H), lambda b, s: (0, 0)),
            pl.BlockSpec((2 * H, 3 * H), lambda b, s: (0, 0)),
            pl.BlockSpec((H, 3 * H), lambda b, s: (0, 0)),
            pl.BlockSpec((1, 3 * H), lambda b, s: (0, 0)),
            pl.BlockSpec((1, 3 * H), lambda b, s: (0, 0)),
            pl.BlockSpec((H, Vp), lambda b, s: (0, 0)),
            pl.BlockSpec((1, Vp), lambda b, s: (0, 0)),
        ],
        out_specs=pl.BlockSpec((Bblk, Vp), lambda b, s: (b, s)),
        scratch_shapes=[pltpu.VMEM((Bblk, H), jnp.float32),
                        pltpu.VMEM((Bblk, Vp), jnp.bfloat16)],
        compiler_params=pltpu.CompilerParams(
            dimension_semantics=("parallel", "arbitrary"),
            vmem_limit_bytes=_vmem_limit(resident)),
    )(enc_tbH, emb, w_in, whh, bih, bhh, wpred, bpred)
    # (B, L1*Vp) -> (B, max_len-1, vocab): free reshape + lane-padding strip
    return out.reshape(B, L1, Vp)[:, :, :vocab]


# ---------------------------------------------------------------------------
# Model glue
# ---------------------------------------------------------------------------
def init_params(key, *, c_in, c_conv, hidden, vocab):
    vocab_p = _round_up(vocab, 128)       # lane-dense padded vocab
    ks = jax.random.split(key, 8)
    p = {}
    # conv 3x3, kaiming-ish normal (fan_out), HWIO layout
    fan_out = 3 * 3 * c_conv
    p["conv_w"] = jax.random.normal(ks[0], (3, 3, c_in, c_conv),
                                    jnp.float32) * jnp.sqrt(2.0 / fan_out)
    p["conv_b"] = jnp.zeros((c_conv,), jnp.float32)
    # encoder GRU (fused gate layout: (r|z|n) along the last axis)
    s = 1.0 / jnp.sqrt(hidden)
    p["enc_W_ih"] = jax.random.normal(ks[1], (c_conv, 3 * hidden)) * s
    p["enc_b_ih"] = jnp.zeros((1, 3 * hidden), jnp.float32)
    p["enc_W_hh"] = jax.random.normal(ks[2], (hidden, 3 * hidden)) * s
    p["enc_b_hh"] = jnp.zeros((1, 3 * hidden), jnp.float32)
    # decoder: embedding padded to vocab_p rows (padded rows never selected)
    emb = jax.random.normal(ks[3], (vocab, hidden)) * 0.1
    p["emb"] = jnp.zeros((vocab_p, hidden), jnp.float32).at[:vocab].set(emb)
    p["dec_W_in"] = jax.random.normal(ks[4], (2 * hidden, 3 * hidden)) * s
    p["dec_Whh"] = jax.random.normal(ks[5], (hidden, 3 * hidden)) * s
    p["dec_bih"] = jnp.zeros((1, 3 * hidden), jnp.float32)
    p["dec_bhh"] = jnp.zeros((1, 3 * hidden), jnp.float32)
    # prediction Linear(hidden, vocab): xavier-normal, zero bias; padded
    # columns get -1e30 bias so the greedy argmax never picks them.
    xav = jnp.sqrt(2.0 / (hidden + vocab))
    wp = jax.random.normal(ks[6], (hidden, vocab)) * xav
    p["W_pred"] = jnp.zeros((hidden, vocab_p), jnp.float32).at[:, :vocab].set(wp)
    p["b_pred"] = jnp.full((1, vocab_p), -1e30, jnp.float32).at[0, :vocab].set(0.0)
    return p


def cnn_seq2seq_forward(params, x_nchw, *, hidden, vocab, max_len):
    B, C_in, Hh, Ww = x_nchw.shape
    x = jnp.transpose(x_nchw, (0, 2, 3, 1))          # NCHW -> NHWC (tiny input)
    bf = jnp.bfloat16

    # --- backbone: fused conv3x3 + leaky_relu + H-collapse (Pallas, kernel 1)
    feat = conv_leaky_hmean(x, params["conv_w"], params["conv_b"])  # (B,T,C) bf16

    # batch split across 2 TensorCores only where they exist (v7x) and the
    # per-core block stays a sublane multiple.
    bsplit = 2 if (_num_tensorcores() >= 2 and B % 16 == 0) else 1

    # --- encoder: time-chunked GRU with fused input projection (kernel 2) ---
    enc_tbH = gru_encoder(feat,
                          params["enc_W_ih"].astype(bf), params["enc_b_ih"],
                          params["enc_W_hh"].astype(bf), params["enc_b_hh"],
                          hidden, bsplit)                       # (T,B,H) bf16

    # --- decoder: greedy attention-GRU + prediction head (kernel 3) ---------
    return greedy_decode(enc_tbH,
                         params["emb"].astype(bf),
                         params["dec_W_in"].astype(bf),
                         params["dec_Whh"].astype(bf),
                         params["dec_bih"], params["dec_bhh"],
                         params["W_pred"].astype(bf), params["b_pred"],
                         max_len, vocab, bsplit)


if __name__ == "__main__":
    B, C_in, Hh, Ww = 2, 1, 16, 16
    HIDDEN, VOCAB, MAX_LEN = 32, 16, 8

    key = jax.random.PRNGKey(0)
    k_x, k_p = jax.random.split(key)
    x = jax.random.normal(k_x, (B, C_in, Hh, Ww), jnp.float32)   # NCHW like PyTorch
    params = init_params(k_p, c_in=C_in, c_conv=HIDDEN,
                         hidden=HIDDEN, vocab=VOCAB)

    out = cnn_seq2seq_forward(params, x, hidden=HIDDEN, vocab=VOCAB,
                              max_len=MAX_LEN)
    out = jax.block_until_ready(out)
    assert out.shape == (B, MAX_LEN - 1, VOCAB), out.shape
    assert jnp.all(jnp.isfinite(out))
    print("KERNEL_OK")
</pallas_src>

<mosaic_0001>
module attributes {stable_mosaic.version = 11 : i64} {
  func.func @_conv_act_hmean_kernel(%arg0: i32, %arg1: memref<1x18x18x1xf32, #tpu.memory_space<vmem>>, %arg2: memref<9x32xf32, #tpu.memory_space<vmem>>, %arg3: memref<1x32xf32, #tpu.memory_space<vmem>>, %arg4: memref<1x16x32xbf16, #tpu.memory_space<vmem>>) attributes {dimension_semantics = [#tpu.dimension_semantics<parallel>], iteration_bounds = array<i64: 2>, scalar_prefetch = 0 : i64, scratch_operands = 0 : i64, tpu.core_type = #tpu.core_type<tc>, window_params = [{transform_indices = @transform_0, window_bounds = array<i64: 1, 18, 18, 1>}, {pipeline_mode = #tpu.pipeline_mode<synchronous>, transform_indices = @transform_1, window_bounds = array<i64: 9, 32>}, {pipeline_mode = #tpu.pipeline_mode<synchronous>, transform_indices = @transform_2, window_bounds = array<i64: 1, 32>}, {transform_indices = @transform_3, window_bounds = array<i64: 1, 16, 32>}]} {
    %c0 = arith.constant 0 : index
    %c0_0 = arith.constant 0 : index
    %c0_1 = arith.constant 0 : index
    %c0_2 = arith.constant 0 : index
    %0 = vector.load %arg1[%c0, %c0_0, %c0_1, %c0_2] : memref<1x18x18x1xf32, #tpu.memory_space<vmem>>, vector<1x18x18x1xf32>
    %1 = vector.shape_cast %0 : vector<1x18x18x1xf32> to vector<18x18x1xf32>
    %cst = arith.constant 0.000000e+00 : f32
    %2 = vector.broadcast %cst : f32 to vector<16x16x32xf32>
    %3 = vector.extract_strided_slice %1 {offsets = [0, 0, 0], sizes = [16, 16, 1], strides = [1, 1, 1]} : vector<18x18x1xf32> to vector<16x16x1xf32>
    %c0_3 = arith.constant 0 : index
    %c0_4 = arith.constant 0 : index
    %4 = vector.load %arg2[%c0_3, %c0_4] : memref<9x32xf32, #tpu.memory_space<vmem>>, vector<1x32xf32>
    %5 = vector.shape_cast %4 : vector<1x32xf32> to vector<1x1x32xf32>
    %6 = vector.broadcast %3 : vector<16x16x1xf32> to vector<16x16x32xf32>
    %7 = vector.broadcast %5 : vector<1x1x32xf32> to vector<16x16x32xf32>
    %8 = arith.mulf %6, %7 : vector<16x16x32xf32>
    %9 = arith.addf %2, %8 : vector<16x16x32xf32>
    %10 = vector.extract_strided_slice %1 {offsets = [0, 1, 0], sizes = [16, 16, 1], strides = [1, 1, 1]} : vector<18x18x1xf32> to vector<16x16x1xf32>
    %c1 = arith.constant 1 : index
    %c0_5 = arith.constant 0 : index
    %11 = vector.load %arg2[%c1, %c0_5] : memref<9x32xf32, #tpu.memory_space<vmem>>, vector<1x32xf32>
    %12 = vector.shape_cast %11 : vector<1x32xf32> to vector<1x1x32xf32>
    %13 = vector.broadcast %10 : vector<16x16x1xf32> to vector<16x16x32xf32>
    %14 = vector.broadcast %12 : vector<1x1x32xf32> to vector<16x16x32xf32>
    %15 = arith.mulf %13, %14 : vector<16x16x32xf32>
    %16 = arith.addf %9, %15 : vector<16x16x32xf32>
    %17 = vector.extract_strided_slice %1 {offsets = [0, 2, 0], sizes = [16, 16, 1], strides = [1, 1, 1]} : vector<18x18x1xf32> to vector<16x16x1xf32>
    %c2 = arith.constant 2 : index
    %c0_6 = arith.constant 0 : index
    %18 = vector.load %arg2[%c2, %c0_6] : memref<9x32xf32, #tpu.memory_space<vmem>>, vector<1x32xf32>
    %19 = vector.shape_cast %18 : vector<1x32xf32> to vector<1x1x32xf32>
    %20 = vector.broadcast %17 : vector<16x16x1xf32> to vector<16x16x32xf32>
    %21 = vector.broadcast %19 : vector<1x1x32xf32> to vector<16x16x32xf32>
    %22 = arith.mulf %20, %21 : vector<16x16x32xf32>
    %23 = arith.addf %16, %22 : vector<16x16x32xf32>
    %24 = vector.extract_strided_slice %1 {offsets = [1, 0, 0], sizes = [16, 16, 1], strides = [1, 1, 1]} : vector<18x18x1xf32> to vector<16x16x1xf32>
    %c3 = arith.constant 3 : index
    %c0_7 = arith.constant 0 : index
    %25 = vector.load %arg2[%c3, %c0_7] : memref<9x32xf32, #tpu.memory_space<vmem>>, vector<1x32xf32>
    %26 = vector.shape_cast %25 : vector<1x32xf32> to vector<1x1x32xf32>
    %27 = vector.broadcast %24 : vector<16x16x1xf32> to vector<16x16x32xf32>
    %28 = vector.broadcast %26 : vector<1x1x32xf32> to vector<16x16x32xf32>
    %29 = arith.mulf %27, %28 : vector<16x16x32xf32>
    %30 = arith.addf %23, %29 : vector<16x16x32xf32>
    %31 = vector.extract_strided_slice %1 {offsets = [1, 1, 0], sizes = [16, 16, 1], strides = [1, 1, 1]} : vector<18x18x1xf32> to vector<16x16x1xf32>
    %c4 = arith.constant 4 : index
    %c0_8 = arith.constant 0 : index
    %32 = vector.load %arg2[%c4, %c0_8] : memref<9x32xf32, #tpu.memory_space<vmem>>, vector<1x32xf32>
    %33 = vector.shape_cast %32 : vector<1x32xf32> to vector<1x1x32xf32>
    %34 = vector.broadcast %31 : vector<16x16x1xf32> to vector<16x16x32xf32>
    %35 = vector.broadcast %33 : vector<1x1x32xf32> to vector<16x16x32xf32>
    %36 = arith.mulf %34, %35 : vector<16x16x32xf32>
    %37 = arith.addf %30, %36 : vector<16x16x32xf32>
    %38 = vector.extract_strided_slice %1 {offsets = [1, 2, 0], sizes = [16, 16, 1], strides = [1, 1, 1]} : vector<18x18x1xf32> to vector<16x16x1xf32>
    %c5 = arith.constant 5 : index
    %c0_9 = arith.constant 0 : index
    %39 = vector.load %arg2[%c5, %c0_9] : memref<9x32xf32, #tpu.memory_space<vmem>>, vector<1x32xf32>
    %40 = vector.shape_cast %39 : vector<1x32xf32> to vector<1x1x32xf32>
    %41 = vector.broadcast %38 : vector<16x16x1xf32> to vector<16x16x32xf32>
    %42 = vector.broadcast %40 : vector<1x1x32xf32> to vector<16x16x32xf32>
    %43 = arith.mulf %41, %42 : vector<16x16x32xf32>
    %44 = arith.addf %37, %43 : vector<16x16x32xf32>
    %45 = vector.extract_strided_slice %1 {offsets = [2, 0, 0], sizes = [16, 16, 1], strides = [1, 1, 1]} : vector<18x18x1xf32> to vector<16x16x1xf32>
    %c6 = arith.constant 6 : index
    %c0_10 = arith.constant 0 : index
    %46 = vector.load %arg2[%c6, %c0_10] : memref<9x32xf32, #tpu.memory_space<vmem>>, vector<1x32xf32>
    %47 = vector.shape_cast %46 : vector<1x32xf32> to vector<1x1x32xf32>
    %48 = vector.broadcast %45 : vector<16x16x1xf32> to vector<16x16x32xf32>
    %49 = vector.broadcast %47 : vector<1x1x32xf32> to vector<16x16x32xf32>
    %50 = arith.mulf %48, %49 : vector<16x16x32xf32>
    %51 = arith.addf %44, %50 : vector<16x16x32xf32>
    %52 = vector.extract_strided_slice %1 {offsets = [2, 1, 0], sizes = [16, 16, 1], strides = [1, 1, 1]} : vector<18x18x1xf32> to vector<16x16x1xf32>
    %c7 = arith.constant 7 : index
    %c0_11 = arith.constant 0 : index
    %53 = vector.load %arg2[%c7, %c0_11] : memref<9x32xf32, #tpu.memory_space<vmem>>, vector<1x32xf32>
    %54 = vector.shape_cast %53 : vector<1x32xf32> to vector<1x1x32xf32>
    %55 = vector.broadcast %52 : vector<16x16x1xf32> to vector<16x16x32xf32>
    %56 = vector.broadcast %54 : vector<1x1x32xf32> to vector<16x16x32xf32>
    %57 = arith.mulf %55, %56 : vector<16x16x32xf32>
    %58 = arith.addf %51, %57 : vector<16x16x32xf32>
    %59 = vector.extract_strided_slice %1 {offsets = [2, 2, 0], sizes = [16, 16, 1], strides = [1, 1, 1]} : vector<18x18x1xf32> to vector<16x16x1xf32>
    %c8 = arith.constant 8 : index
    %c0_12 = arith.constant 0 : index
    %60 = vector.load %arg2[%c8, %c0_12] : memref<9x32xf32, #tpu.memory_space<vmem>>, vector<1x32xf32>
    %61 = vector.shape_cast %60 : vector<1x32xf32> to vector<1x1x32xf32>
    %62 = vector.broadcast %59 : vector<16x16x1xf32> to vector<16x16x32xf32>
    %63 = vector.broadcast %61 : vector<1x1x32xf32> to vector<16x16x32xf32>
    %64 = arith.mulf %62, %63 : vector<16x16x32xf32>
    %65 = arith.addf %58, %64 : vector<16x16x32xf32>
    %c0_13 = arith.constant 0 : index
    %c0_14 = arith.constant 0 : index
    %66 = vector.load %arg3[%c0_13, %c0_14] : memref<1x32xf32, #tpu.memory_space<vmem>>, vector<1x32xf32>
    %67 = vector.shape_cast %66 : vector<1x32xf32> to vector<1x1x32xf32>
    %68 = vector.broadcast %67 : vector<1x1x32xf32> to vector<16x16x32xf32>
    %69 = arith.addf %65, %68 : vector<16x16x32xf32>
    %cst_15 = arith.constant 0.000000e+00 : f32
    %70 = vector.broadcast %cst_15 : f32 to vector<16x16x32xf32>
    %71 = arith.cmpf oge, %69, %70 : vector<16x16x32xf32>
    %cst_16 = arith.constant 0.00999999977 : f32
    %72 = vector.broadcast %cst_16 : f32 to vector<16x16x32xf32>
    %73 = arith.mulf %72, %69 : vector<16x16x32xf32>
    %74 = arith.select %71, %69, %73 : vector<16x16x32xi1>, vector<16x16x32xf32>
    %cst_17 = arith.constant dense<0.000000e+00> : vector<16x32xf32>
    %75 = vector.multi_reduction <add>, %74, %cst_17 [0] : vector<16x16x32xf32> to vector<16x32xf32>
    %cst_18 = arith.constant 1.600000e+01 : f32
    %76 = vector.broadcast %cst_18 : f32 to vector<16x32xf32>
    %77 = arith.divf %75, %76 : vector<16x32xf32>
    %78 = arith.truncf %77 : vector<16x32xf32> to vector<16x32xbf16>
    %c0_19 = arith.constant 0 : index
    %c0_20 = arith.constant 0 : index
    %c0_21 = arith.constant 0 : index
    %79 = vector.load %arg4[%c0_19, %c0_20, %c0_21] : memref<1x16x32xbf16, #tpu.memory_space<vmem>>, vector<1x16x32xbf16>
    %80 = vector.shape_cast %79 : vector<1x16x32xbf16> to vector<16x32xbf16>
    %81 = vector.shape_cast %78 : vector<16x32xbf16> to vector<1x16x32xbf16>
    tpu.vector_store %arg4[%c0_19, %c0_20, %c0_21], %81 {strides = array<i32>} : memref<1x16x32xbf16, #tpu.memory_space<vmem>>, vector<1x16x32xbf16>,
    return
  }
  func.func @transform_0(%arg0: i32) -> (i32, i32, i32, i32) {
    %c0_i32 = arith.constant 0 : i32
    %c0_i32_0 = arith.constant 0 : i32
    %c0_i32_1 = arith.constant 0 : i32
    %c0_i32_2 = arith.constant 0 : i32
    return %arg0, %c0_i32, %c0_i32_0, %c0_i32_1 : i32, i32, i32, i32
  }
  func.func @transform_1(%arg0: i32) -> (i32, i32) {
    %c0_i32 = arith.constant 0 : i32
    %c0_i32_0 = arith.constant 0 : i32
    %c0_i32_1 = arith.constant 0 : i32
    return %c0_i32, %c0_i32_0 : i32, i32
  }
  func.func @transform_2(%arg0: i32) -> (i32, i32) {
    %c0_i32 = arith.constant 0 : i32
    %c0_i32_0 = arith.constant 0 : i32
    %c0_i32_1 = arith.constant 0 : i32
    return %c0_i32, %c0_i32_0 : i32, i32
  }
  func.func @transform_3(%arg0: i32) -> (i32, i32, i32) {
    %c0_i32 = arith.constant 0 : i32
    %c0_i32_0 = arith.constant 0 : i32
    %c0_i32_1 = arith.constant 0 : i32
    return %arg0, %c0_i32, %c0_i32_0 : i32, i32, i32
  }
}

</mosaic_0001>

<llo_original>
// kernel: tpu_custom_call.1
$region0: #{tpu_custom_call.1}
  #allocation0 [shape = 'u32[]', space=smem, size = 0x4, offset = 0x4, fixed_abs, tag = 'smem constant byte address 0x4 - core index']
  #allocation1 [shape = 'u32[144,128]{1,0:T(1,128)}', space=vmem, size = 0x12000, scoped, tag = 'internal scratch']
  %s0 = inlined_call_operand.vmem [shape: f32[2,18,18,1], index: 0, kind: input, shape index: {}]
  %s1 = inlined_call_operand.vmem [shape: f32[9,32], index: 1, kind: input, shape index: {}]
  %s2 = inlined_call_operand.vmem [shape: f32[1,32], index: 2, kind: input, shape index: {}]
  %s3 = inlined_call_operand.hbm [shape: bf16[2,16,32], index: 3, kind: output, shape index: {}]
  %s4 = sld [smem:[#allocation0]]
  $region45: #{tpu_custom_call.1} parent=0
    _
  %s6 = ssub.s32 1, %s4
  %s7 = scalar_select 0, %s6, %s4
  $region1: #{tpu_custom_call.1} parent=0
    #allocation2 [shape = 'u8[8192]{0}', space=vmem, size = 0x2000, scoped, tag = 'output window, operand 0']
    #allocation3 [shape = 's32[2]{0}', space=sflag, size = 0x8, scoped, tag = 'scoped memory for tpu_custom_call.1']
    %8 = vsyncpa [#allocation3], 0
    %s9 = scalar_lea.sflag [#allocation3], 1
    %10 = vsyncpa %s9, 0
    loop: start=0, step=1, limit=4
    $region2: #{tpu_custom_call.1} parent=1 // loop_pre_header
      _
    $region3: #{tpu_custom_call.1} parent=1 // loop_header
      %s12 = sphi 0, %s16
      %p13 = scmp.ge.s32.totalorder %s12, 4
      %s22 = sphi 0, %s24
      %s25 = sphi 0, %s22
      %s26 = sphi 0, %s25
      %s42 = sphi 0, %s26
      %s46 = sphi 0, %s46
      %s48 = sphi 0, %s46
      %s49 = sphi 0, %s48
      %s63 = sphi 0, %s49
      %s67 = sphi 0, %s67
      %s69 = sphi 0, %s67
      %s70 = sphi 0, %s69
      %s84 = sphi 0, %s70
      %s90 = sphi 0, %s92
      %s93 = sphi 0, %s90
      %s94 = sphi 0, %s93
      %s110 = sphi 0, %s94
    $region4: #{tpu_custom_call.1} parent=1 // loop_header_branch
      %15 = sbr.rel (%p13) target = $region8
    $region5: #{tpu_custom_call.1} parent=1 // loop_body
      %s17 = ssub.s32 %s12, 1
      %s18 = ssub.s32 %s12, 2
      %s19 = sadd.s32 %s12, 1
      %s20 = ssub.s32 %s12, %s19
      %p21 = scmp.eq.s32.totalorder %s20, 0
      %s23 = sadd.s32 %s22, 1
      %s24 = scalar_select %p21, %s22, %s23
      %p27 = pneg %p21
      %p28 = scmp.eq.s32.totalorder %s12, 1
      %p29 = por %p27, %p28
      %p30 = scmp.ne.s32.totalorder %s22, %s25
      %p31 = scmp.eq.s32.totalorder %s12, 0
      %p32 = por %p30, %p31
      %p33 = scmp.ne.s32.totalorder %s22, %s25
      %p34 = scmp.eq.s32.totalorder %s17, 1
      %p35 = por %p33, %p34
      %p36 = scmp.ne.s32.totalorder %s25, %s26
      %p37 = scmp.eq.s32.totalorder %s17, 0
      %p38 = por %p36, %p37
      %p39 = scmp.ne.s32.totalorder %s25, %s26
      %p40 = scmp.eq.s32.totalorder %s18, 1
      %p41 = por %p39, %p40
      %p43 = scmp.ne.s32.totalorder %s26, %s42
      %p44 = scmp.eq.s32.totalorder %s18, 0
      %p45 = por %p43, %p44
      %s47 = sadd.s32 %s46, 1
      %p50 = scmp.eq.s32.totalorder %s12, 1
      %p51 = scmp.ne.s32.totalorder %s46, %s48
      %p52 = scmp.eq.s32.totalorder %s12, 0
      %p53 = por %p51, %p52
      %p54 = scmp.ne.s32.totalorder %s46, %s48
      %p55 = scmp.eq.s32.totalorder %s17, 1
      %p56 = por %p54, %p55
      %p57 = scmp.ne.s32.totalorder %s48, %s49
      %p58 = scmp.eq.s32.totalorder %s17, 0
      %p59 = por %p57, %p58
      %p60 = scmp.ne.s32.totalorder %s48, %s49
      %p61 = scmp.eq.s32.totalorder %s18, 1
      %p62 = por %p60, %p61
      %p64 = scmp.ne.s32.totalorder %s49, %s63
      %p65 = scmp.eq.s32.totalorder %s18, 0
      %p66 = por %p64, %p65
      %s68 = sadd.s32 %s67, 1
      %p71 = scmp.eq.s32.totalorder %s12, 1
      %p72 = scmp.ne.s32.totalorder %s67, %s69
      %p73 = scmp.eq.s32.totalorder %s12, 0
      %p74 = por %p72, %p73
      %p75 = scmp.ne.s32.totalorder %s67, %s69
      %p76 = scmp.eq.s32.totalorder %s17, 1
      %p77 = por %p75, %p76
      %p78 = scmp.ne.s32.totalorder %s69, %s70
      %p79 = scmp.eq.s32.totalorder %s17, 0
      %p80 = por %p78, %p79
      %p81 = scmp.ne.s32.totalorder %s69, %s70
      %p82 = scmp.eq.s32.totalorder %s18, 1
      %p83 = por %p81, %p82
      %p85 = scmp.ne.s32.totalorder %s70, %s84
      %p86 = scmp.eq.s32.totalorder %s18, 0
      %p87 = por %p85, %p86
      %s88 = ssub.s32 %s12, %s19
      %p89 = scmp.eq.s32.totalorder %s88, 0
      %s91 = sadd.s32 %s90, 1
      %s92 = scalar_select %p89, %s90, %s91
      %p95 = pneg %p89
      %p96 = scmp.eq.s32.totalorder %s12, 1
      %p97 = por %p95, %p96
      %p98 = scmp.ne.s32.totalorder %s90, %s93
      %p99 = scmp.eq.s32.totalorder %s12, 0
      %p100 = por %p98, %p99
      %p101 = scmp.ne.s32.totalorder %s90, %s93
      %p102 = scmp.eq.s32.totalorder %s17, 1
      %p103 = por %p101, %p102
      %p104 = scmp.ne.s32.totalorder %s93, %s94
      %p105 = scmp.eq.s32.totalorder %s17, 0
      %p106 = por %p104, %p105
      %p107 = scmp.ne.s32.totalorder %s93, %s94
      %p108 = scmp.eq.s32.totalorder %s18, 1
      %p109 = por %p107, %p108
      %p111 = scmp.ne.s32.totalorder %s94, %s110
      %p112 = scmp.eq.s32.totalorder %s18, 0
      %p113 = por %p111, %p112
      %p114 = scmp.le.s32.totalorder 1, %s12
      %p115 = scmp.lt.s32.totalorder %s12, 3
      %p116 = pnand %p114, %p115
      %p117 = pneg %p116
      // Predicated region
      $region9: #{tpu_custom_call.1} parent=5 // pred_check
        _
      $region10: #{tpu_custom_call.1} parent=5 // pred_check_branch
        %119 = sbr.rel (%p116) target = $region12
      $region11: #{tpu_custom_call.1} parent=5 // pred_region
        %s120 = ssub.s32 %s12, 1
        // Predicated region
        $region13: #{tpu_custom_call.1} parent=11 // pred_check
          %p121 = pneg %p59
        $region14: #{tpu_custom_call.1} parent=11 // pred_check_branch
          %123 = sbr.rel (%p121) target = $region16
        $region15: #{tpu_custom_call.1} parent=11 // pred_region
          _
        $region16: #{tpu_custom_call.1} parent=11 // pred_fallthru
          _
        // Predicated region
        $region17: #{tpu_custom_call.1} parent=11 // pred_check
          %p124 = pneg %p80
        $region18: #{tpu_custom_call.1} parent=11 // pred_check_branch
          %126 = sbr.rel (%p124) target = $region20
        $region19: #{tpu_custom_call.1} parent=11 // pred_region
          _
        $region20: #{tpu_custom_call.1} parent=11 // pred_fallthru
          _
      $region12: #{tpu_custom_call.1} parent=5 // pred_fallthru
        _
      %p127 = scmp.lt.s32.totalorder %s12, 2
      // Predicated region
      $region21: #{tpu_custom_call.1} parent=5 // pred_check
        %p128 = pneg %p127
      $region22: #{tpu_custom_call.1} parent=5 // pred_check_branch
        %130 = sbr.rel (%p128) target = $region24
      $region23: #{tpu_custom_call.1} parent=5 // pred_region
        // Predicated region
        $region25: #{tpu_custom_call.1} parent=23 // pred_check
          %p131 = pneg %p32
        $region26: #{tpu_custom_call.1} parent=23 // pred_check_branch
          %133 = sbr.rel (%p131) target = $region28
        $region27: #{tpu_custom_call.1} parent=23 // pred_region
          %p134 = scmp.lt.s32.totalorder %s12, 1
          %s135 = scalar_select %p134, %s12, 1
          %s136 = smul.addr %s135, 54
          %s137 = smul.addr %s136, 8
          %s138 = scalar_lea.vmem %s0, %s137
        $region28: #{tpu_custom_call.1} parent=23 // pred_fallthru
          _
      $region24: #{tpu_custom_call.1} parent=5 // pred_fallthru
        _
      %p139 = scmp.le.s32.totalorder 1, %s12
      %p140 = scmp.lt.s32.totalorder %s12, 3
      %p141 = pnand %p139, %p140
      %p142 = pneg %p141
      // Predicated region
      $region29: #{tpu_custom_call.1} parent=5 // pred_check
        _
      $region30: #{tpu_custom_call.1} parent=5 // pred_check_branch
        %144 = sbr.rel (%p141) target = $region32
      $region31: #{tpu_custom_call.1} parent=5 // pred_region
        %s145 = ssub.s32 %s12, 1
        %p146 = scmp.lt.s32.totalorder %s17, 1
        %s147 = scalar_select %p146, %s17, 1
        %s148 = smul.addr %s147, 54
        %s149 = smul.addr %s148, 8
        %s150 = scalar_lea.vmem %s0, %s149
        %p151 = pneg %p38
        %p152 = pneg %p35
        %p153 = pneg %p59
        %p154 = pneg %p56
        %p155 = pneg %p80
        %p156 = pneg %p77
        %p157 = pneg %p106
        %p158 = pneg %p103
        %s159 = sand.u32 %s93, 1
        %s160 = scalar_lea.sflag [#allocation3], %s159
        %s161 = sand.u32 %s93, 1
        %s162 = smul.addr %s161, 8
        %s163 = scalar_lea.vmem [#allocation2], %s162
        %p164 = scmp.lt.s32.totalorder %s17, 1
        %s165 = scalar_select %p164, %s17, 1
        %s166 = smul.addr %s165, 54
        %s167 = smul.addr %s166, 8
        %s168 = scalar_lea.vmem %s0, %s167
        %v169 = vld [vmem:[%s168] sm:$0xff]
        %v170 = vld [vmem:[%s168 + $0x8] sm:$0xff]
        %v171 = vld [vmem:[%s168 + $0x10] sm:$0x3]
        %v172 = vld [vmem:[%s168 + $0x18] sm:$0xff]
        %v173 = vld [vmem:[%s168 + $0x20] sm:$0xff]
        %v174 = vld [vmem:[%s168 + $0x28] sm:$0x3]
        %v175 = vld [vmem:[%s168 + $0x30] sm:$0xff]
        %v176 = vld [vmem:[%s168 + $0x38] sm:$0xff]
        %v177 = vld [vmem:[%s168 + $0x40] sm:$0x3]
        %v178 = vld [vmem:[%s168 + $0x48] sm:$0xff]
        %v179 = vld [vmem:[%s168 + $0x50] sm:$0xff]
        %v180 = vld [vmem:[%s168 + $0x58] sm:$0x3]
        %v181 = vld [vmem:[%s168 + $0x60] sm:$0xff]
        %v182 = vld [vmem:[%s168 + $0x68] sm:$0xff]
        %v183 = vld [vmem:[%s168 + $0x70] sm:$0x3]
        %v184 = vld [vmem:[%s168 + $0x78] sm:$0xff]
        %v185 = vld [vmem:[%s168 + $0x80] sm:$0xff]
        %v186 = vld [vmem:[%s168 + $0x88] sm:$0x3]
        %v187 = vld [vmem:[%s168 + $0x90] sm:$0xff]
        %v188 = vld [vmem:[%s168 + $0x98] sm:$0xff]
        %v189 = vld [vmem:[%s168 + $0xa0] sm:$0x3]
        %v190 = vld [vmem:[%s168 + $0xa8] sm:$0xff]
        %v191 = vld [vmem:[%s168 + $0xb0] sm:$0xff]
        %v192 = vld [vmem:[%s168 + $0xb8] sm:$0x3]
        %v193 = vld [vmem:[%s168 + $0xc0] sm:$0xff]
        %v194 = vld [vmem:[%s168 + $0xc8] sm:$0xff]
        %v195 = vld [vmem:[%s168 + $0xd0] sm:$0x3]
        %v196 = vld [vmem:[%s168 + $0xd8] sm:$0xff]
        %v197 = vld [vmem:[%s168 + $0xe0] sm:$0xff]
        %v198 = vld [vmem:[%s168 + $0xe8] sm:$0x3]
        %v199 = vld [vmem:[%s168 + $0xf0] sm:$0xff]
        %v200 = vld [vmem:[%s168 + $0xf8] sm:$0xff]
        %v201 = vld [vmem:[%s168 + $0x100] sm:$0x3]
        %v202 = vld [vmem:[%s168 + $0x108] sm:$0xff]
        %v203 = vld [vmem:[%s168 + $0x110] sm:$0xff]
        %v204 = vld [vmem:[%s168 + $0x118] sm:$0x3]
        %v205 = vld [vmem:[%s168 + $0x120] sm:$0xff]
        %v206 = vld [vmem:[%s168 + $0x128] sm:$0xff]
        %v207 = vld [vmem:[%s168 + $0x130] sm:$0x3]
        %v208 = vld [vmem:[%s168 + $0x138] sm:$0xff]
        %v209 = vld [vmem:[%s168 + $0x140] sm:$0xff]
        %v210 = vld [vmem:[%s168 + $0x148] sm:$0x3]
        %v211 = vld [vmem:[%s168 + $0x150] sm:$0xff]
        %v212 = vld [vmem:[%s168 + $0x158] sm:$0xff]
        %v213 = vld [vmem:[%s168 + $0x160] sm:$0x3]
        %v214 = vld [vmem:[%s168 + $0x168] sm:$0xff]
        %v215 = vld [vmem:[%s168 + $0x170] sm:$0xff]
        %v216 = vld [vmem:[%s168 + $0x178] sm:$0x3]
        %v217 = vld [vmem:[%s168 + $0x180] sm:$0xff]
        %v218 = vld [vmem:[%s168 + $0x188] sm:$0xff]
        %v219 = vld [vmem:[%s168 + $0x190] sm:$0x3]
        %v220 = vld [vmem:[%s168 + $0x198] sm:$0xff]
        %v221 = vld [vmem:[%s168 + $0x1a0] sm:$0xff]
        %v222 = vld [vmem:[%s168 + $0x1a8] sm:$0x3]
        %v223 = vld [vmem:[%s1] sm:$0x1]
        %225 = vset.pattern.permute.xlu0 0
        %226 = vperm.xlu0 %225, %v169
        %v227 = vpop.permute.xlu0 %226
        %230 = vset.pattern.permute.xlu0 0
        %231 = vperm.xlu0 %230, %v170
        %v232 = vpop.permute.xlu0 %231
        %235 = vset.pattern.permute.xlu0 0
        %236 = vperm.xlu0 %235, %v172
        %v237 = vpop.permute.xlu0 %236
        %240 = vset.pattern.permute.xlu0 0
        %241 = vperm.xlu0 %240, %v173
        %v242 = vpop.permute.xlu0 %241
        %245 = vset.pattern.permute.xlu0 0
        %246 = vperm.xlu0 %245, %v175
        %v247 = vpop.permute.xlu0 %246
        %250 = vset.pattern.permute.xlu0 0
        %251 = vperm.xlu0 %250, %v176
        %v252 = vpop.permute.xlu0 %251
        %255 = vset.pattern.permute.xlu0 0
        %256 = vperm.xlu0 %255, %v178
        %v257 = vpop.permute.xlu0 %256
        %260 = vset.pattern.permute.xlu0 0
        %261 = vperm.xlu0 %260, %v179
        %v262 = vpop.permute.xlu0 %261
        %265 = vset.pattern.permute.xlu0 0
        %266 = vperm.xlu0 %265, %v181
        %v267 = vpop.permute.xlu0 %266
        %270 = vset.pattern.permute.xlu0 0
        %271 = vperm.xlu0 %270, %v182
        %v272 = vpop.permute.xlu0 %271
        %275 = vset.pattern.permute.xlu0 0
        %276 = vperm.xlu0 %275, %v184
        %v277 = vpop.permute.xlu0 %276
        %280 = vset.pattern.permute.xlu0 0
        %281 = vperm.xlu0 %280, %v185
        %v282 = vpop.permute.xlu0 %281
        %285 = vset.pattern.permute.xlu0 0
        %286 = vperm.xlu0 %285, %v187
        %v287 = vpop.permute.xlu0 %286
        %290 = vset.pattern.permute.xlu0 0
        %291 = vperm.xlu0 %290, %v188
        %v292 = vpop.permute.xlu0 %291
        %295 = vset.pattern.permute.xlu0 0
        %296 = vperm.xlu0 %295, %v190
        %v297 = vpop.permute.xlu0 %296
        %300 = vset.pattern.permute.xlu0 0
        %301 = vperm.xlu0 %300, %v191
        %v302 = vpop.permute.xlu0 %301
        %305 = vset.pattern.permute.xlu0 0
        %306 = vperm.xlu0 %305, %v193
        %v307 = vpop.permute.xlu0 %306
        %310 = vset.pattern.permute.xlu0 0
        %311 = vperm.xlu0 %310, %v194
        %v312 = vpop.permute.xlu0 %311
        %315 = vset.pattern.permute.xlu0 0
        %316 = vperm.xlu0 %315, %v196
        %v317 = vpop.permute.xlu0 %316
        %320 = vset.pattern.permute.xlu0 0
        %321 = vperm.xlu0 %320, %v197
        %v322 = vpop.permute.xlu0 %321
        %325 = vset.pattern.permute.xlu0 0
        %326 = vperm.xlu0 %325, %v199
        %v327 = vpop.permute.xlu0 %326
        %330 = vset.pattern.permute.xlu0 0
        %331 = vperm.xlu0 %330, %v200
        %v332 = vpop.permute.xlu0 %331
        %335 = vset.pattern.permute.xlu0 0
        %336 = vperm.xlu0 %335, %v202
        %v337 = vpop.permute.xlu0 %336
        %340 = vset.pattern.permute.xlu0 0
        %341 = vperm.xlu0 %340, %v203
        %v342 = vpop.permute.xlu0 %341
        %345 = vset.pattern.permute.xlu0 0
        %346 = vperm.xlu0 %345, %v205
        %v347 = vpop.permute.xlu0 %346
        %350 = vset.pattern.permute.xlu0 0
        %351 = vperm.xlu0 %350, %v206
        %v352 = vpop.permute.xlu0 %351
        %355 = vset.pattern.permute.xlu0 0
        %356 = vperm.xlu0 %355, %v208
        %v357 = vpop.permute.xlu0 %356
        %360 = vset.pattern.permute.xlu0 0
        %361 = vperm.xlu0 %360, %v209
        %v362 = vpop.permute.xlu0 %361
        %365 = vset.pattern.permute.xlu0 0
        %366 = vperm.xlu0 %365, %v211
        %v367 = vpop.permute.xlu0 %366
        %370 = vset.pattern.permute.xlu0 0
        %371 = vperm.xlu0 %370, %v212
        %v372 = vpop.permute.xlu0 %371
        %375 = vset.pattern.permute.xlu0 0
        %376 = vperm.xlu0 %375, %v214
        %v377 = vpop.permute.xlu0 %376
        %380 = vset.pattern.permute.xlu0 0
        %381 = vperm.xlu0 %380, %v215
        %v382 = vpop.permute.xlu0 %381
        %v384 = vlaneseq
        %v385 = vshrl.u32 %v384, 7
        %v386 = vsub.s32 0, %v385
        %v387 = vrot.slane %v223, %v386
        %v388 = vmul.f32 %v227, %v387
        %v389 = vmul.f32 %v232, %v387
        %v390 = vmul.f32 %v237, %v387
        %v391 = vmul.f32 %v242, %v387
        %v392 = vmul.f32 %v247, %v387
        %v393 = vmul.f32 %v252, %v387
        %v394 = vmul.f32 %v257, %v387
        %v395 = vmul.f32 %v262, %v387
        %v396 = vmul.f32 %v267, %v387
        %v397 = vmul.f32 %v272, %v387
        %v398 = vmul.f32 %v277, %v387
        %v399 = vmul.f32 %v282, %v387
        %v400 = vmul.f32 %v287, %v387
        %v401 = vmul.f32 %v292, %v387
        %v402 = vmul.f32 %v297, %v387
        %v403 = vmul.f32 %v302, %v387
        %v404 = vmul.f32 %v307, %v387
        %v405 = vmul.f32 %v312, %v387
        %v406 = vmul.f32 %v317, %v387
        %v407 = vmul.f32 %v322, %v387
        %v408 = vmul.f32 %v327, %v387
        %v409 = vmul.f32 %v332, %v387
        %v410 = vmul.f32 %v337, %v387
        %v411 = vmul.f32 %v342, %v387
        %v412 = vmul.f32 %v347, %v387
        %v413 = vmul.f32 %v352, %v387
        %v414 = vmul.f32 %v357, %v387
        %v415 = vmul.f32 %v362, %v387
        %v416 = vmul.f32 %v367, %v387
        %v417 = vmul.f32 %v372, %v387
        %v418 = vmul.f32 %v377, %v387
        %v419 = vmul.f32 %v382, %v387
        %v420 = vadd.f32 %v388, 0.0
        %v421 = vadd.f32 %v389, 0.0
        %v422 = vadd.f32 %v390, 0.0
        %v423 = vadd.f32 %v391, 0.0
        %v424 = vadd.f32 %v392, 0.0
        %v425 = vadd.f32 %v393, 0.0
        %v426 = vadd.f32 %v394, 0.0
        %v427 = vadd.f32 %v395, 0.0
        %v428 = vadd.f32 %v396, 0.0
        %v429 = vadd.f32 %v397, 0.0
        %v430 = vadd.f32 %v398, 0.0
        %v431 = vadd.f32 %v399, 0.0
        %v432 = vadd.f32 %v400, 0.0
        %v433 = vadd.f32 %v401, 0.0
        %v434 = vadd.f32 %v402, 0.0
        %v435 = vadd.f32 %v403, 0.0
        %v436 = vadd.f32 %v404, 0.0
        %v437 = vadd.f32 %v405, 0.0
        %v438 = vadd.f32 %v406, 0.0
        %v439 = vadd.f32 %v407, 0.0
        %v440 = vadd.f32 %v408, 0.0
        %v441 = vadd.f32 %v409, 0.0
        %v442 = vadd.f32 %v410, 0.0
        %v443 = vadd.f32 %v411, 0.0
        %v444 = vadd.f32 %v412, 0.0
        %v445 = vadd.f32 %v413, 0.0
        %v446 = vadd.f32 %v414, 0.0
        %v447 = vadd.f32 %v415, 0.0
        %v448 = vadd.f32 %v416, 0.0
        %v449 = vadd.f32 %v417, 0.0
        %v450 = vadd.f32 %v418, 0.0
        %v451 = vadd.f32 %v419, 0.0
        %v452 = vld [vmem:[%s1 + $0x1] sm:$0x1]
        %454 = vset.pattern.permute.xlu0 0
        %455 = vperm.xlu0 %454, %v171
        %v456 = vpop.permute.xlu0 %455
        %459 = vset.pattern.permute.xlu0 0
        %460 = vperm.xlu0 %459, %v174
        %v461 = vpop.permute.xlu0 %460
        %464 = vset.pattern.permute.xlu0 0
        %465 = vperm.xlu0 %464, %v177
        %v466 = vpop.permute.xlu0 %465
        %469 = vset.pattern.permute.xlu0 0
        %470 = vperm.xlu0 %469, %v180
        %v471 = vpop.permute.xlu0 %470
        %474 = vset.pattern.permute.xlu0 0
        %475 = vperm.xlu0 %474, %v183
        %v476 = vpop.permute.xlu0 %475
        %479 = vset.pattern.permute.xlu0 0
        %480 = vperm.xlu0 %479, %v186
        %v481 = vpop.permute.xlu0 %480
        %484 = vset.pattern.permute.xlu0 0
        %485 = vperm.xlu0 %484, %v189
        %v486 = vpop.permute.xlu0 %485
        %489 = vset.pattern.permute.xlu0 0
        %490 = vperm.xlu0 %489, %v192
        %v491 = vpop.permute.xlu0 %490
        %494 = vset.pattern.permute.xlu0 0
        %495 = vperm.xlu0 %494, %v195
        %v496 = vpop.permute.xlu0 %495
        %499 = vset.pattern.permute.xlu0 0
        %500 = vperm.xlu0 %499, %v198
        %v501 = vpop.permute.xlu0 %500
        %504 = vset.pattern.permute.xlu0 0
        %505 = vperm.xlu0 %504, %v201
        %v506 = vpop.permute.xlu0 %505
        %509 = vset.pattern.permute.xlu0 0
        %510 = vperm.xlu0 %509, %v204
        %v511 = vpop.permute.xlu0 %510
        %514 = vset.pattern.permute.xlu0 0
        %515 = vperm.xlu0 %514, %v207
        %v516 = vpop.permute.xlu0 %515
        %519 = vset.pattern.permute.xlu0 0
        %520 = vperm.xlu0 %519, %v210
        %v521 = vpop.permute.xlu0 %520
        %524 = vset.pattern.permute.xlu0 0
        %525 = vperm.xlu0 %524, %v213
        %v526 = vpop.permute.xlu0 %525
        %529 = vset.pattern.permute.xlu0 0
        %530 = vperm.xlu0 %529, %v216
        %v531 = vpop.permute.xlu0 %530
        %v533 = vlaneseq
        %v534 = vshrl.u32 %v533, 7
        %v535 = vsub.s32 0, %v534
        %v536 = vrot.slane %v452, %v535
        %v537 = vmul.f32 %v227, %v536
        %v538 = vmul.f32 %v232, %v536
        %v539 = vmul.f32 %v456, %v536
        %v540 = vmul.f32 %v237, %v536
        %v541 = vmul.f32 %v242, %v536
        %v542 = vmul.f32 %v461, %v536
        %v543 = vmul.f32 %v247, %v536
        %v544 = vmul.f32 %v252, %v536
        %v545 = vmul.f32 %v466, %v536
        %v546 = vmul.f32 %v257, %v536
        %v547 = vmul.f32 %v262, %v536
        %v548 = vmul.f32 %v471, %v536
        %v549 = vmul.f32 %v267, %v536
        %v550 = vmul.f32 %v272, %v536
        %v551 = vmul.f32 %v476, %v536
        %v552 = vmul.f32 %v277, %v536
        %v553 = vmul.f32 %v282, %v536
        %v554 = vmul.f32 %v481, %v536
        %v555 = vmul.f32 %v287, %v536
        %v556 = vmul.f32 %v292, %v536
        %v557 = vmul.f32 %v486, %v536
        %v558 = vmul.f32 %v297, %v536
        %v559 = vmul.f32 %v302, %v536
        %v560 = vmul.f32 %v491, %v536
        %v561 = vmul.f32 %v307, %v536
        %v562 = vmul.f32 %v312, %v536
        %v563 = vmul.f32 %v496, %v536
        %v564 = vmul.f32 %v317, %v536
        %v565 = vmul.f32 %v322, %v536
        %v566 = vmul.f32 %v501, %v536
        %v567 = vmul.f32 %v327, %v536
        %v568 = vmul.f32 %v332, %v536
        %v569 = vmul.f32 %v506, %v536
        %v570 = vmul.f32 %v337, %v536
        %v571 = vmul.f32 %v342, %v536
        %v572 = vmul.f32 %v511, %v536
        %v573 = vmul.f32 %v347, %v536
        %v574 = vmul.f32 %v352, %v536
        %v575 = vmul.f32 %v516, %v536
        %v576 = vmul.f32 %v357, %v536
        %v577 = vmul.f32 %v362, %v536
        %v578 = vmul.f32 %v521, %v536
        %v579 = vmul.f32 %v367, %v536
        %v580 = vmul.f32 %v372, %v536
        %v581 = vmul.f32 %v526, %v536
        %v582 = vmul.f32 %v377, %v536
        %v583 = vmul.f32 %v382, %v536
        %v584 = vmul.f32 %v531, %v536
        %vm633 = vcmask 1046528
        %v634 = vrot.slane %v537, 1
        %v635 = vrot.slane %v538, 1
        %v636 = vsel %vm633, %v634, %v635
        %v637 = vrot.slane %v539, 1
        %v638 = vsel %vm633, %v635, %v637
        %v639 = vrot.slane %v540, 1
        %v640 = vrot.slane %v541, 1
        %v641 = vsel %vm633, %v639, %v640
        %v642 = vrot.slane %v542, 1
        %v643 = vsel %vm633, %v640, %v642
        %v644 = vrot.slane %v543, 1
        %v645 = vrot.slane %v544, 1
        %v646 = vsel %vm633, %v644, %v645
        %v647 = vrot.slane %v545, 1
        %v648 = vsel %vm633, %v645, %v647
        %v649 = vrot.slane %v546, 1
        %v650 = vrot.slane %v547, 1
        %v651 = vsel %vm633, %v649, %v650
        %v652 = vrot.slane %v548, 1
        %v653 = vsel %vm633, %v650, %v652
        %v654 = vrot.slane %v549, 1
        %v655 = vrot.slane %v550, 1
        %v656 = vsel %vm633, %v654, %v655
        %v657 = vrot.slane %v551, 1
        %v658 = vsel %vm633, %v655, %v657
        %v659 = vrot.slane %v552, 1
        %v660 = vrot.slane %v553, 1
        %v661 = vsel %vm633, %v659, %v660
        %v662 = vrot.slane %v554, 1
        %v663 = vsel %vm633, %v660, %v662
        %v664 = vrot.slane %v555, 1
        %v665 = vrot.slane %v556, 1
        %v666 = vsel %vm633, %v664, %v665
        %v667 = vrot.slane %v557, 1
        %v668 = vsel %vm633, %v665, %v667
        %v669 = vrot.slane %v558, 1
        %v670 = vrot.slane %v559, 1
        %v671 = vsel %vm633, %v669, %v670
        %v672 = vrot.slane %v560, 1
        %v673 = vsel %vm633, %v670, %v672
        %v674 = vrot.slane %v561, 1
        %v675 = vrot.slane %v562, 1
        %v676 = vsel %vm633, %v674, %v675
        %v677 = vrot.slane %v563, 1
        %v678 = vsel %vm633, %v675, %v677
        %v679 = vrot.slane %v564, 1
        %v680 = vrot.slane %v565, 1
        %v681 = vsel %vm633, %v679, %v680
        %v682 = vrot.slane %v566, 1
        %v683 = vsel %vm633, %v680, %v682
        %v684 = vrot.slane %v567, 1
        %v685 = vrot.slane %v568, 1
        %v686 = vsel %vm633, %v684, %v685
        %v687 = vrot.slane %v569, 1
        %v688 = vsel %vm633, %v685, %v687
        %v689 = vrot.slane %v570, 1
        %v690 = vrot.slane %v571, 1
        %v691 = vsel %vm633, %v689, %v690
        %v692 = vrot.slane %v572, 1
        %v693 = vsel %vm633, %v690, %v692
        %v694 = vrot.slane %v573, 1
        %v695 = vrot.slane %v574, 1
        %v696 = vsel %vm633, %v694, %v695
        %v697 = vrot.slane %v575, 1
        %v698 = vsel %vm633, %v695, %v697
        %v699 = vrot.slane %v576, 1
        %v700 = vrot.slane %v577, 1
        %v701 = vsel %vm633, %v699, %v700
        %v702 = vrot.slane %v578, 1
        %v703 = vsel %vm633, %v700, %v702
        %v704 = vrot.slane %v579, 1
        %v705 = vrot.slane %v580, 1
        %v706 = vsel %vm633, %v704, %v705
        %v707 = vrot.slane %v581, 1
        %v708 = vsel %vm633, %v705, %v707
        %v709 = vrot.slane %v582, 1
        %v710 = vrot.slane %v583, 1
        %v711 = vsel %vm633, %v709, %v710
        %v712 = vrot.slane %v584, 1
        %v713 = vsel %vm633, %v710, %v712
        %v746 = vadd.f32 %v420, %v636
        %v747 = vadd.f32 %v421, %v638
        %v748 = vadd.f32 %v422, %v641
        %v749 = vadd.f32 %v423, %v643
        %v750 = vadd.f32 %v424, %v646
        %v751 = vadd.f32 %v425, %v648
        %v752 = vadd.f32 %v426, %v651
        %v753 = vadd.f32 %v427, %v653
        %v754 = vadd.f32 %v428, %v656
        %v755 = vadd.f32 %v429, %v658
        %v756 = vadd.f32 %v430, %v661
        %v757 = vadd.f32 %v431, %v663
        %v758 = vadd.f32 %v432, %v666
        %v759 = vadd.f32 %v433, %v668
        %v760 = vadd.f32 %v434, %v671
        %v761 = vadd.f32 %v435, %v673
        %v762 = vadd.f32 %v436, %v676
        %v763 = vadd.f32 %v437, %v678
        %v764 = vadd.f32 %v438, %v681
        %v765 = vadd.f32 %v439, %v683
        %v766 = vadd.f32 %v440, %v686
        %v767 = vadd.f32 %v441, %v688
        %v768 = vadd.f32 %v442, %v691
        %v769 = vadd.f32 %v443, %v693
        %v770 = vadd.f32 %v444, %v696
        %v771 = vadd.f32 %v445, %v698
        %v772 = vadd.f32 %v446, %v701
        %v773 = vadd.f32 %v447, %v703
        %v774 = vadd.f32 %v448, %v706
        %v775 = vadd.f32 %v449, %v708
        %v776 = vadd.f32 %v450, %v711
        %v777 = vadd.f32 %v451, %v713
        %v778 = vld [vmem:[%s1 + $0x2] sm:$0x1]
        %v779 = vlaneseq
        %v780 = vshrl.u32 %v779, 7
        %v781 = vsub.s32 0, %v780
        %v782 = vrot.slane %v778, %v781
        %v783 = vmul.f32 %v227, %v782
        %v784 = vmul.f32 %v232, %v782
        %v785 = vmul.f32 %v456, %v782
        %v786 = vmul.f32 %v237, %v782
        %v787 = vmul.f32 %v242, %v782
        %v788 = vmul.f32 %v461, %v782
        %v789 = vmul.f32 %v247, %v782
        %v790 = vmul.f32 %v252, %v782
        %v791 = vmul.f32 %v466, %v782
        %v792 = vmul.f32 %v257, %v782
        %v793 = vmul.f32 %v262, %v782
        %v794 = vmul.f32 %v471, %v782
        %v795 = vmul.f32 %v267, %v782
        %v796 = vmul.f32 %v272, %v782
        %v797 = vmul.f32 %v476, %v782
        %v798 = vmul.f32 %v277, %v782
        %v799 = vmul.f32 %v282, %v782
        %v800 = vmul.f32 %v481, %v782
        %v801 = vmul.f32 %v287, %v782
        %v802 = vmul.f32 %v292, %v782
        %v803 = vmul.f32 %v486, %v782
        %v804 = vmul.f32 %v297, %v782
        %v805 = vmul.f32 %v302, %v782
        %v806 = vmul.f32 %v491, %v782
        %v807 = vmul.f32 %v307, %v782
        %v808 = vmul.f32 %v312, %v782
        %v809 = vmul.f32 %v496, %v782
        %v810 = vmul.f32 %v317, %v782
        %v811 = vmul.f32 %v322, %v782
        %v812 = vmul.f32 %v501, %v782
        %v813 = vmul.f32 %v327, %v782
        %v814 = vmul.f32 %v332, %v782
        %v815 = vmul.f32 %v506, %v782
        %v816 = vmul.f32 %v337, %v782
        %v817 = vmul.f32 %v342, %v782
        %v818 = vmul.f32 %v511, %v782
        %v819 = vmul.f32 %v347, %v782
        %v820 = vmul.f32 %v352, %v782
        %v821 = vmul.f32 %v516, %v782
        %v822 = vmul.f32 %v357, %v782
        %v823 = vmul.f32 %v362, %v782
        %v824 = vmul.f32 %v521, %v782
        %v825 = vmul.f32 %v367, %v782
        %v826 = vmul.f32 %v372, %v782
        %v827 = vmul.f32 %v526, %v782
        %v828 = vmul.f32 %v377, %v782
        %v829 = vmul.f32 %v382, %v782
        %v830 = vmul.f32 %v531, %v782
        %vm879 = vcmask 1045504
        %v880 = vrot.slane %v783, 2
        %v881 = vrot.slane %v784, 2
        %v882 = vsel %vm879, %v880, %v881
        %v883 = vrot.slane %v785, 2
        %v884 = vsel %vm879, %v881, %v883
        %v885 = vrot.slane %v786, 2
        %v886 = vrot.slane %v787, 2
        %v887 = vsel %vm879, %v885, %v886
        %v888 = vrot.slane %v788, 2
        %v889 = vsel %vm879, %v886, %v888
        %v890 = vrot.slane %v789, 2
        %v891 = vrot.slane %v790, 2
        %v892 = vsel %vm879, %v890, %v891
        %v893 = vrot.slane %v791, 2
        %v894 = vsel %vm879, %v891, %v893
        %v895 = vrot.slane %v792, 2
        %v896 = vrot.slane %v793, 2
        %v897 = vsel %vm879, %v895, %v896
        %v898 = vrot.slane %v794, 2
        %v899 = vsel %vm879, %v896, %v898
        %v900 = vrot.slane %v795, 2
        %v901 = vrot.slane %v796, 2
        %v902 = vsel %vm879, %v900, %v901
        %v903 = vrot.slane %v797, 2
        %v904 = vsel %vm879, %v901, %v903
        %v905 = vrot.slane %v798, 2
        %v906 = vrot.slane %v799, 2
        %v907 = vsel %vm879, %v905, %v906
        %v908 = vrot.slane %v800, 2
        %v909 = vsel %vm879, %v906, %v908
        %v910 = vrot.slane %v801, 2
        %v911 = vrot.slane %v802, 2
        %v912 = vsel %vm879, %v910, %v911
        %v913 = vrot.slane %v803, 2
        %v914 = vsel %vm879, %v911, %v913
        %v915 = vrot.slane %v804, 2
        %v916 = vrot.slane %v805, 2
        %v917 = vsel %vm879, %v915, %v916
        %v918 = vrot.slane %v806, 2
        %v919 = vsel %vm879, %v916, %v918
        %v920 = vrot.slane %v807, 2
        %v921 = vrot.slane %v808, 2
        %v922 = vsel %vm879, %v920, %v921
        %v923 = vrot.slane %v809, 2
        %v924 = vsel %vm879, %v921, %v923
        %v925 = vrot.slane %v810, 2
        %v926 = vrot.slane %v811, 2
        %v927 = vsel %vm879, %v925, %v926
        %v928 = vrot.slane %v812, 2
        %v929 = vsel %vm879, %v926, %v928
        %v930 = vrot.slane %v813, 2
        %v931 = vrot.slane %v814, 2
        %v932 = vsel %vm879, %v930, %v931
        %v933 = vrot.slane %v815, 2
        %v934 = vsel %vm879, %v931, %v933
        %v935 = vrot.slane %v816, 2
        %v936 = vrot.slane %v817, 2
        %v937 = vsel %vm879, %v935, %v936
        %v938 = vrot.slane %v818, 2
        %v939 = vsel %vm879, %v936, %v938
        %v940 = vrot.slane %v819, 2
        %v941 = vrot.slane %v820, 2
        %v942 = vsel %vm879, %v940, %v941
        %v943 = vrot.slane %v821, 2
        %v944 = vsel %vm879, %v941, %v943
        %v945 = vrot.slane %v822, 2
        %v946 = vrot.slane %v823, 2
        %v947 = vsel %vm879, %v945, %v946
        %v948 = vrot.slane %v824, 2
        %v949 = vsel %vm879, %v946, %v948
        %v950 = vrot.slane %v825, 2
        %v951 = vrot.slane %v826, 2
        %v952 = vsel %vm879, %v950, %v951
        %v953 = vrot.slane %v827, 2
        %v954 = vsel %vm879, %v951, %v953
        %v955 = vrot.slane %v828, 2
        %v956 = vrot.slane %v829, 2
        %v957 = vsel %vm879, %v955, %v956
        %v958 = vrot.slane %v830, 2
        %v959 = vsel %vm879, %v956, %v958
        %v992 = vadd.f32 %v746, %v882
        %v993 = vadd.f32 %v747, %v884
        %v994 = vadd.f32 %v748, %v887
        %v995 = vadd.f32 %v749, %v889
        %v996 = vadd.f32 %v750, %v892
        %v997 = vadd.f32 %v751, %v894
        %v998 = vadd.f32 %v752, %v897
        %v999 = vadd.f32 %v753, %v899
        %v1000 = vadd.f32 %v754, %v902
        %v1001 = vadd.f32 %v755, %v904
        %v1002 = vadd.f32 %v756, %v907
        %v1003 = vadd.f32 %v757, %v909
        %v1004 = vadd.f32 %v758, %v912
        %v1005 = vadd.f32 %v759, %v914
        %v1006 = vadd.f32 %v760, %v917
        %v1007 = vadd.f32 %v761, %v919
        %v1008 = vadd.f32 %v762, %v922
        %v1009 = vadd.f32 %v763, %v924
        %v1010 = vadd.f32 %v764, %v927
        %v1011 = vadd.f32 %v765, %v929
        %v1012 = vadd.f32 %v766, %v932
        %v1013 = vadd.f32 %v767, %v934
        %v1014 = vadd.f32 %v768, %v937
        %v1015 = vadd.f32 %v769, %v939
        %v1016 = vadd.f32 %v770, %v942
        %v1017 = vadd.f32 %v771, %v944
        %v1018 = vadd.f32 %v772, %v947
        %v1019 = vadd.f32 %v773, %v949
        %v1020 = vadd.f32 %v774, %v952
        %v1021 = vadd.f32 %v775, %v954
        %v1022 = vadd.f32 %v776, %v957
        %v1023 = vadd.f32 %v777, %v959
        %v1024 = vld [vmem:[%s1 + $0x3] sm:$0x1]
        %1026 = vset.pattern.permute.xlu0 0
        %1027 = vperm.xlu0 %1026, %v217
        %v1028 = vpop.permute.xlu0 %1027
        %1031 = vset.pattern.permute.xlu0 0
        %1032 = vperm.xlu0 %1031, %v218
        %v1033 = vpop.permute.xlu0 %1032
        %v1035 = vlaneseq
        %v1036 = vshrl.u32 %v1035, 7
        %v1037 = vsub.s32 0, %v1036
        %v1038 = vrot.slane %v1024, %v1037
        %v1039 = vmul.f32 %v237, %v1038
        %v1040 = vmul.f32 %v242, %v1038
        %v1041 = vmul.f32 %v247, %v1038
        %v1042 = vmul.f32 %v252, %v1038
        %v1043 = vmul.f32 %v257, %v1038
        %v1044 = vmul.f32 %v262, %v1038
        %v1045 = vmul.f32 %v267, %v1038
        %v1046 = vmul.f32 %v272, %v1038
        %v1047 = vmul.f32 %v277, %v1038
        %v1048 = vmul.f32 %v282, %v1038
        %v1049 = vmul.f32 %v287, %v1038
        %v1050 = vmul.f32 %v292, %v1038
        %v1051 = vmul.f32 %v297, %v1038
        %v1052 = vmul.f32 %v302, %v1038
        %v1053 = vmul.f32 %v307, %v1038
        %v1054 = vmul.f32 %v312, %v1038
        %v1055 = vmul.f32 %v317, %v1038
        %v1056 = vmul.f32 %v322, %v1038
        %v1057 = vmul.f32 %v327, %v1038
        %v1058 = vmul.f32 %v332, %v1038
        %v1059 = vmul.f32 %v337, %v1038
        %v1060 = vmul.f32 %v342, %v1038
        %v1061 = vmul.f32 %v347, %v1038
        %v1062 = vmul.f32 %v352, %v1038
        %v1063 = vmul.f32 %v357, %v1038
        %v1064 = vmul.f32 %v362, %v1038
        %v1065 = vmul.f32 %v367, %v1038
        %v1066 = vmul.f32 %v372, %v1038
        %v1067 = vmul.f32 %v377, %v1038
        %v1068 = vmul.f32 %v382, %v1038
        %v1069 = vmul.f32 %v1028, %v1038
        %v1070 = vmul.f32 %v1033, %v1038
        %v1071 = vadd.f32 %v992, %v1039
        %v1072 = vadd.f32 %v993, %v1040
        %v1073 = vadd.f32 %v994, %v1041
        %v1074 = vadd.f32 %v995, %v1042
        %v1075 = vadd.f32 %v996, %v1043
        %v1076 = vadd.f32 %v997, %v1044
        %v1077 = vadd.f32 %v998, %v1045
        %v1078 = vadd.f32 %v999, %v1046
        %v1079 = vadd.f32 %v1000, %v1047
        %v1080 = vadd.f32 %v1001, %v1048
        %v1081 = vadd.f32 %v1002, %v1049
        %v1082 = vadd.f32 %v1003, %v1050
        %v1083 = vadd.f32 %v1004, %v1051
        %v1084 = vadd.f32 %v1005, %v1052
        %v1085 = vadd.f32 %v1006, %v1053
        %v1086 = vadd.f32 %v1007, %v1054
        %v1087 = vadd.f32 %v1008, %v1055
        %v1088 = vadd.f32 %v1009, %v1056
        %v1089 = vadd.f32 %v1010, %v1057
        %v1090 = vadd.f32 %v1011, %v1058
        %v1091 = vadd.f32 %v1012, %v1059
        %v1092 = vadd.f32 %v1013, %v1060
        %v1093 = vadd.f32 %v1014, %v1061
        %v1094 = vadd.f32 %v1015, %v1062
        %v1095 = vadd.f32 %v1016, %v1063
        %v1096 = vadd.f32 %v1017, %v1064
        %v1097 = vadd.f32 %v1018, %v1065
        %v1098 = vadd.f32 %v1019, %v1066
        %v1099 = vadd.f32 %v1020, %v1067
        %v1100 = vadd.f32 %v1021, %v1068
        %v1101 = vadd.f32 %v1022, %v1069
        %v1102 = vadd.f32 %v1023, %v1070
        %v1103 = vld [vmem:[%s1 + $0x4] sm:$0x1]
        %1105 = vset.pattern.permute.xlu0 0
        %1106 = vperm.xlu0 %1105, %v219
        %v1107 = vpop.permute.xlu0 %1106
        %v1109 = vlaneseq
        %v1110 = vshrl.u32 %v1109, 7
        %v1111 = vsub.s32 0, %v1110
        %v1112 = vrot.slane %v1103, %v1111
        %v1113 = vmul.f32 %v237, %v1112
        %v1114 = vmul.f32 %v242, %v1112
        %v1115 = vmul.f32 %v461, %v1112
        %v1116 = vmul.f32 %v247, %v1112
        %v1117 = vmul.f32 %v252, %v1112
        %v1118 = vmul.f32 %v466, %v1112
        %v1119 = vmul.f32 %v257, %v1112
        %v1120 = vmul.f32 %v262, %v1112
        %v1121 = vmul.f32 %v471, %v1112
        %v1122 = vmul.f32 %v267, %v1112
        %v1123 = vmul.f32 %v272, %v1112
        %v1124 = vmul.f32 %v476, %v1112
        %v1125 = vmul.f32 %v277, %v1112
        %v1126 = vmul.f32 %v282, %v1112
        %v1127 = vmul.f32 %v481, %v1112
        %v1128 = vmul.f32 %v287, %v1112
        %v1129 = vmul.f32 %v292, %v1112
        %v1130 = vmul.f32 %v486, %v1112
        %v1131 = vmul.f32 %v297, %v1112
        %v1132 = vmul.f32 %v302, %v1112
        %v1133 = vmul.f32 %v491, %v1112
        %v1134 = vmul.f32 %v307, %v1112
        %v1135 = vmul.f32 %v312, %v1112
        %v1136 = vmul.f32 %v496, %v1112
        %v1137 = vmul.f32 %v317, %v1112
        %v1138 = vmul.f32 %v322, %v1112
        %v1139 = vmul.f32 %v501, %v1112
        %v1140 = vmul.f32 %v327, %v1112
        %v1141 = vmul.f32 %v332, %v1112
        %v1142 = vmul.f32 %v506, %v1112
        %v1143 = vmul.f32 %v337, %v1112
        %v1144 = vmul.f32 %v342, %v1112
        %v1145 = vmul.f32 %v511, %v1112
        %v1146 = vmul.f32 %v347, %v1112
        %v1147 = vmul.f32 %v352, %v1112
        %v1148 = vmul.f32 %v516, %v1112
        %v1149 = vmul.f32 %v357, %v1112
        %v1150 = vmul.f32 %v362, %v1112
        %v1151 = vmul.f32 %v521, %v1112
        %v1152 = vmul.f32 %v367, %v1112
        %v1153 = vmul.f32 %v372, %v1112
        %v1154 = vmul.f32 %v526, %v1112
        %v1155 = vmul.f32 %v377, %v1112
        %v1156 = vmul.f32 %v382, %v1112
        %v1157 = vmul.f32 %v531, %v1112
        %v1158 = vmul.f32 %v1028, %v1112
        %v1159 = vmul.f32 %v1033, %v1112
        %v1160 = vmul.f32 %v1107, %v1112
        %v1209 = vrot.slane %v1113, 1
        %v1210 = vrot.slane %v1114, 1
        %v1211 = vsel %vm633, %v1209, %v1210
        %v1212 = vrot.slane %v1115, 1
        %v1213 = vsel %vm633, %v1210, %v1212
        %v1214 = vrot.slane %v1116, 1
        %v1215 = vrot.slane %v1117, 1
        %v1216 = vsel %vm633, %v1214, %v1215
        %v1217 = vrot.slane %v1118, 1
        %v1218 = vsel %vm633, %v1215, %v1217
        %v1219 = vrot.slane %v1119, 1
        %v1220 = vrot.slane %v1120, 1
        %v1221 = vsel %vm633, %v1219, %v1220
        %v1222 = vrot.slane %v1121, 1
        %v1223 = vsel %vm633, %v1220, %v1222
        %v1224 = vrot.slane %v1122, 1
        %v1225 = vrot.slane %v1123, 1
        %v1226 = vsel %vm633, %v1224, %v1225
        %v1227 = vrot.slane %v1124, 1
        %v1228 = vsel %vm633, %v1225, %v1227
        %v1229 = vrot.slane %v1125, 1
        %v1230 = vrot.slane %v1126, 1
        %v1231 = vsel %vm633, %v1229, %v1230
        %v1232 = vrot.slane %v1127, 1
        %v1233 = vsel %vm633, %v1230, %v1232
        %v1234 = vrot.slane %v1128, 1
        %v1235 = vrot.slane %v1129, 1
        %v1236 = vsel %vm633, %v1234, %v1235
        %v1237 = vrot.slane %v1130, 1
        %v1238 = vsel %vm633, %v1235, %v1237
        %v1239 = vrot.slane %v1131, 1
        %v1240 = vrot.slane %v1132, 1
        %v1241 = vsel %vm633, %v1239, %v1240
        %v1242 = vrot.slane %v1133, 1
        %v1243 = vsel %vm633, %v1240, %v1242
        %v1244 = vrot.slane %v1134, 1
        %v1245 = vrot.slane %v1135, 1
        %v1246 = vsel %vm633, %v1244, %v1245
        %v1247 = vrot.slane %v1136, 1
        %v1248 = vsel %vm633, %v1245, %v1247
        %v1249 = vrot.slane %v1137, 1
        %v1250 = vrot.slane %v1138, 1
        %v1251 = vsel %vm633, %v1249, %v1250
        %v1252 = vrot.slane %v1139, 1
        %v1253 = vsel %vm633, %v1250, %v1252
        %v1254 = vrot.slane %v1140, 1
        %v1255 = vrot.slane %v1141, 1
        %v1256 = vsel %vm633, %v1254, %v1255
        %v1257 = vrot.slane %v1142, 1
        %v1258 = vsel %vm633, %v1255, %v1257
        %v1259 = vrot.slane %v1143, 1
        %v1260 = vrot.slane %v1144, 1
        %v1261 = vsel %vm633, %v1259, %v1260
        %v1262 = vrot.slane %v1145, 1
        %v1263 = vsel %vm633, %v1260, %v1262
        %v1264 = vrot.slane %v1146, 1
        %v1265 = vrot.slane %v1147, 1
        %v1266 = vsel %vm633, %v1264, %v1265
        %v1267 = vrot.slane %v1148, 1
        %v1268 = vsel %vm633, %v1265, %v1267
        %v1269 = vrot.slane %v1149, 1
        %v1270 = vrot.slane %v1150, 1
        %v1271 = vsel %vm633, %v1269, %v1270
        %v1272 = vrot.slane %v1151, 1
        %v1273 = vsel %vm633, %v1270, %v1272
        %v1274 = vrot.slane %v1152, 1
        %v1275 = vrot.slane %v1153, 1
        %v1276 = vsel %vm633, %v1274, %v1275
        %v1277 = vrot.slane %v1154, 1
        %v1278 = vsel %vm633, %v1275, %v1277
        %v1279 = vrot.slane %v1155, 1
        %v1280 = vrot.slane %v1156, 1
        %v1281 = vsel %vm633, %v1279, %v1280
        %v1282 = vrot.slane %v1157, 1
        %v1283 = vsel %vm633, %v1280, %v1282
        %v1284 = vrot.slane %v1158, 1
        %v1285 = vrot.slane %v1159, 1
        %v1286 = vsel %vm633, %v1284, %v1285
        %v1287 = vrot.slane %v1160, 1
        %v1288 = vsel %vm633, %v1285, %v1287
        %v1321 = vadd.f32 %v1071, %v1211
        %v1322 = vadd.f32 %v1072, %v1213
        %v1323 = vadd.f32 %v1073, %v1216
        %v1324 = vadd.f32 %v1074, %v1218
        %v1325 = vadd.f32 %v1075, %v1221
        %v1326 = vadd.f32 %v1076, %v1223
        %v1327 = vadd.f32 %v1077, %v1226
        %v1328 = vadd.f32 %v1078, %v1228
        %v1329 = vadd.f32 %v1079, %v1231
        %v1330 = vadd.f32 %v1080, %v1233
        %v1331 = vadd.f32 %v1081, %v1236
        %v1332 = vadd.f32 %v1082, %v1238
        %v1333 = vadd.f32 %v1083, %v1241
        %v1334 = vadd.f32 %v1084, %v1243
        %v1335 = vadd.f32 %v1085, %v1246
        %v1336 = vadd.f32 %v1086, %v1248
        %v1337 = vadd.f32 %v1087, %v1251
        %v1338 = vadd.f32 %v1088, %v1253
        %v1339 = vadd.f32 %v1089, %v1256
        %v1340 = vadd.f32 %v1090, %v1258
        %v1341 = vadd.f32 %v1091, %v1261
        %v1342 = vadd.f32 %v1092, %v1263
        %v1343 = vadd.f32 %v1093, %v1266
        %v1344 = vadd.f32 %v1094, %v1268
        %v1345 = vadd.f32 %v1095, %v1271
        %v1346 = vadd.f32 %v1096, %v1273
        %v1347 = vadd.f32 %v1097, %v1276
        %v1348 = vadd.f32 %v1098, %v1278
        %v1349 = vadd.f32 %v1099, %v1281
        %v1350 = vadd.f32 %v1100, %v1283
        %v1351 = vadd.f32 %v1101, %v1286
        %v1352 = vadd.f32 %v1102, %v1288
        %v1353 = vld [vmem:[%s1 + $0x5] sm:$0x1]
        %v1354 = vlaneseq
        %v1355 = vshrl.u32 %v1354, 7
        %v1356 = vsub.s32 0, %v1355
        %v1357 = vrot.slane %v1353, %v1356
        %v1358 = vmul.f32 %v237, %v1357
        %v1359 = vmul.f32 %v242, %v1357
        %v1360 = vmul.f32 %v461, %v1357
        %v1361 = vmul.f32 %v247, %v1357
        %v1362 = vmul.f32 %v252, %v1357
        %v1363 = vmul.f32 %v466, %v1357
        %v1364 = vmul.f32 %v257, %v1357
        %v1365 = vmul.f32 %v262, %v1357
        %v1366 = vmul.f32 %v471, %v1357
        %v1367 = vmul.f32 %v267, %v1357
        %v1368 = vmul.f32 %v272, %v1357
        %v1369 = vmul.f32 %v476, %v1357
        %v1370 = vmul.f32 %v277, %v1357
        %v1371 = vmul.f32 %v282, %v1357
        %v1372 = vmul.f32 %v481, %v1357
        %v1373 = vmul.f32 %v287, %v1357
        %v1374 = vmul.f32 %v292, %v1357
        %v1375 = vmul.f32 %v486, %v1357
        %v1376 = vmul.f32 %v297, %v1357
        %v1377 = vmul.f32 %v302, %v1357
        %v1378 = vmul.f32 %v491, %v1357
        %v1379 = vmul.f32 %v307, %v1357
        %v1380 = vmul.f32 %v312, %v1357
        %v1381 = vmul.f32 %v496, %v1357
        %v1382 = vmul.f32 %v317, %v1357
        %v1383 = vmul.f32 %v322, %v1357
        %v1384 = vmul.f32 %v501, %v1357
        %v1385 = vmul.f32 %v327, %v1357
        %v1386 = vmul.f32 %v332, %v1357
        %v1387 = vmul.f32 %v506, %v1357
        %v1388 = vmul.f32 %v337, %v1357
        %v1389 = vmul.f32 %v342, %v1357
        %v1390 = vmul.f32 %v511, %v1357
        %v1391 = vmul.f32 %v347, %v1357
        %v1392 = vmul.f32 %v352, %v1357
        %v1393 = vmul.f32 %v516, %v1357
        %v1394 = vmul.f32 %v357, %v1357
        %v1395 = vmul.f32 %v362, %v1357
        %v1396 = vmul.f32 %v521, %v1357
        %v1397 = vmul.f32 %v367, %v1357
        %v1398 = vmul.f32 %v372, %v1357
        %v1399 = vmul.f32 %v526, %v1357
        %v1400 = vmul.f32 %v377, %v1357
        %v1401 = vmul.f32 %v382, %v1357
        %v1402 = vmul.f32 %v531, %v1357
        %v1403 = vmul.f32 %v1028, %v1357
        %v1404 = vmul.f32 %v1033, %v1357
        %v1405 = vmul.f32 %v1107, %v1357
        %v1454 = vrot.slane %v1358, 2
        %v1455 = vrot.slane %v1359, 2
        %v1456 = vsel %vm879, %v1454, %v1455
        %v1457 = vrot.slane %v1360, 2
        %v1458 = vsel %vm879, %v1455, %v1457
        %v1459 = vrot.slane %v1361, 2
        %v1460 = vrot.slane %v1362, 2
        %v1461 = vsel %vm879, %v1459, %v1460
        %v1462 = vrot.slane %v1363, 2
        %v1463 = vsel %vm879, %v1460, %v1462
        %v1464 = vrot.slane %v1364, 2
        %v1465 = vrot.slane %v1365, 2
        %v1466 = vsel %vm879, %v1464, %v1465
        %v1467 = vrot.slane %v1366, 2
        %v1468 = vsel %vm879, %v1465, %v1467
        %v1469 = vrot.slane %v1367, 2
        %v1470 = vrot.slane %v1368, 2
        %v1471 = vsel %vm879, %v1469, %v1470
        %v1472 = vrot.slane %v1369, 2
        %v1473 = vsel %vm879, %v1470, %v1472
        %v1474 = vrot.slane %v1370, 2
        %v1475 = vrot.slane %v1371, 2
        %v1476 = vsel %vm879, %v1474, %v1475
        %v1477 = vrot.slane %v1372, 2
        %v1478 = vsel %vm879, %v1475, %v1477
        %v1479 = vrot.slane %v1373, 2
        %v1480 = vrot.slane %v1374, 2
        %v1481 = vsel %vm879, %v1479, %v1480
        %v1482 = vrot.slane %v1375, 2
        %v1483 = vsel %vm879, %v1480, %v1482
        %v1484 = vrot.slane %v1376, 2
        %v1485 = vrot.slane %v1377, 2
        %v1486 = vsel %vm879, %v1484, %v1485
        %v1487 = vrot.slane %v1378, 2
        %v1488 = vsel %vm879, %v1485, %v1487
        %v1489 = vrot.slane %v1379, 2
        %v1490 = vrot.slane %v1380, 2
        %v1491 = vsel %vm879, %v1489, %v1490
        %v1492 = vrot.slane %v1381, 2
        %v1493 = vsel %vm879, %v1490, %v1492
        %v1494 = vrot.slane %v1382, 2
        %v1495 = vrot.slane %v1383, 2
        %v1496 = vsel %vm879, %v1494, %v1495
        %v1497 = vrot.slane %v1384, 2
        %v1498 = vsel %vm879, %v1495, %v1497
        %v1499 = vrot.slane %v1385, 2
        %v1500 = vrot.slane %v1386, 2
        %v1501 = vsel %vm879, %v1499, %v1500
        %v1502 = vrot.slane %v1387, 2
        %v1503 = vsel %vm879, %v1500, %v1502
        %v1504 = vrot.slane %v1388, 2
        %v1505 = vrot.slane %v1389, 2
        %v1506 = vsel %vm879, %v1504, %v1505
        %v1507 = vrot.slane %v1390, 2
        %v1508 = vsel %vm879, %v1505, %v1507
        %v1509 = vrot.slane %v1391, 2
        %v1510 = vrot.slane %v1392, 2
        %v1511 = vsel %vm879, %v1509, %v1510
        %v1512 = vrot.slane %v1393, 2
        %v1513 = vsel %vm879, %v1510, %v1512
        %v1514 = vrot.slane %v1394, 2
        %v1515 = vrot.slane %v1395, 2
        %v1516 = vsel %vm879, %v1514, %v1515
        %v1517 = vrot.slane %v1396, 2
        %v1518 = vsel %vm879, %v1515, %v1517
        %v1519 = vrot.slane %v1397, 2
        %v1520 = vrot.slane %v1398, 2
        %v1521 = vsel %vm879, %v1519, %v1520
        %v1522 = vrot.slane %v1399, 2
        %v1523 = vsel %vm879, %v1520, %v1522
        %v1524 = vrot.slane %v1400, 2
        %v1525 = vrot.slane %v1401, 2
        %v1526 = vsel %vm879, %v1524, %v1525
        %v1527 = vrot.slane %v1402, 2
        %v1528 = vsel %vm879, %v1525, %v1527
        %v1529 = vrot.slane %v1403, 2
        %v1530 = vrot.slane %v1404, 2
        %v1531 = vsel %vm879, %v1529, %v1530
        %v1532 = vrot.slane %v1405, 2
        %v1533 = vsel %vm879, %v1530, %v1532
        %v1566 = vadd.f32 %v1321, %v1456
        %v1567 = vadd.f32 %v1322, %v1458
        %v1568 = vadd.f32 %v1323, %v1461
        %v1569 = vadd.f32 %v1324, %v1463
        %v1570 = vadd.f32 %v1325, %v1466
        %v1571 = vadd.f32 %v1326, %v1468
        %v1572 = vadd.f32 %v1327, %v1471
        %v1573 = vadd.f32 %v1328, %v1473
        %v1574 = vadd.f32 %v1329, %v1476
        %v1575 = vadd.f32 %v1330, %v1478
        %v1576 = vadd.f32 %v1331, %v1481
        %v1577 = vadd.f32 %v1332, %v1483
        %v1578 = vadd.f32 %v1333, %v1486
        %v1579 = vadd.f32 %v1334, %v1488
        %v1580 = vadd.f32 %v1335, %v1491
        %v1581 = vadd.f32 %v1336, %v1493
        %v1582 = vadd.f32 %v1337, %v1496
        %v1583 = vadd.f32 %v1338, %v1498
        %v1584 = vadd.f32 %v1339, %v1501
        %v1585 = vadd.f32 %v1340, %v1503
        %v1586 = vadd.f32 %v1341, %v1506
        %v1587 = vadd.f32 %v1342, %v1508
        %v1588 = vadd.f32 %v1343, %v1511
        %v1589 = vadd.f32 %v1344, %v1513
        %v1590 = vadd.f32 %v1345, %v1516
        %v1591 = vadd.f32 %v1346, %v1518
        %v1592 = vadd.f32 %v1347, %v1521
        %v1593 = vadd.f32 %v1348, %v1523
        %v1594 = vadd.f32 %v1349, %v1526
        %v1595 = vadd.f32 %v1350, %v1528
        %v1596 = vadd.f32 %v1351, %v1531
        %v1597 = vadd.f32 %v1352, %v1533
        %v1598 = vld [vmem:[%s1 + $0x6] sm:$0x1]
        %1600 = vset.pattern.permute.xlu0 0
        %1601 = vperm.xlu0 %1600, %v220
        %v1602 = vpop.permute.xlu0 %1601
        %1605 = vset.pattern.permute.xlu0 0
        %1606 = vperm.xlu0 %1605, %v221
        %v1607 = vpop.permute.xlu0 %1606
        %v1609 = vlaneseq
        %v1610 = vshrl.u32 %v1609, 7
        %v1611 = vsub.s32 0, %v1610
        %v1612 = vrot.slane %v1598, %v1611
        %v1613 = vmul.f32 %v247, %v1612
        %v1614 = vmul.f32 %v252, %v1612
        %v1615 = vmul.f32 %v257, %v1612
        %v1616 = vmul.f32 %v262, %v1612
        %v1617 = vmul.f32 %v267, %v1612
        %v1618 = vmul.f32 %v272, %v1612
        %v1619 = vmul.f32 %v277, %v1612
        %v1620 = vmul.f32 %v282, %v1612
        %v1621 = vmul.f32 %v287, %v1612
        %v1622 = vmul.f32 %v292, %v1612
        %v1623 = vmul.f32 %v297, %v1612
        %v1624 = vmul.f32 %v302, %v1612
        %v1625 = vmul.f32 %v307, %v1612
        %v1626 = vmul.f32 %v312, %v1612
        %v1627 = vmul.f32 %v317, %v1612
        %v1628 = vmul.f32 %v322, %v1612
        %v1629 = vmul.f32 %v327, %v1612
        %v1630 = vmul.f32 %v332, %v1612
        %v1631 = vmul.f32 %v337, %v1612
        %v1632 = vmul.f32 %v342, %v1612
        %v1633 = vmul.f32 %v347, %v1612
        %v1634 = vmul.f32 %v352, %v1612
        %v1635 = vmul.f32 %v357, %v1612
        %v1636 = vmul.f32 %v362, %v1612
        %v1637 = vmul.f32 %v367, %v1612
        %v1638 = vmul.f32 %v372, %v1612
        %v1639 = vmul.f32 %v377, %v1612
        %v1640 = vmul.f32 %v382, %v1612
        %v1641 = vmul.f32 %v1028, %v1612
        %v1642 = vmul.f32 %v1033, %v1612
        %v1643 = vmul.f32 %v1602, %v1612
        %v1644 = vmul.f32 %v1607, %v1612
        %v1645 = vadd.f32 %v1566, %v1613
        %v1646 = vadd.f32 %v1567, %v1614
        %v1647 = vadd.f32 %v1568, %v1615
        %v1648 = vadd.f32 %v1569, %v1616
        %v1649 = vadd.f32 %v1570, %v1617
        %v1650 = vadd.f32 %v1571, %v1618
        %v1651 = vadd.f32 %v1572, %v1619
        %v1652 = vadd.f32 %v1573, %v1620
        %v1653 = vadd.f32 %v1574, %v1621
        %v1654 = vadd.f32 %v1575, %v1622
        %v1655 = vadd.f32 %v1576, %v1623
        %v1656 = vadd.f32 %v1577, %v1624
        %v1657 = vadd.f32 %v1578, %v1625
        %v1658 = vadd.f32 %v1579, %v1626
        %v1659 = vadd.f32 %v1580, %v1627
        %v1660 = vadd.f32 %v1581, %v1628
        %v1661 = vadd.f32 %v1582, %v1629
        %v1662 = vadd.f32 %v1583, %v1630
        %v1663 = vadd.f32 %v1584, %v1631
        %v1664 = vadd.f32 %v1585, %v1632
        %v1665 = vadd.f32 %v1586, %v1633
        %v1666 = vadd.f32 %v1587, %v1634
        %v1667 = vadd.f32 %v1588, %v1635
        %v1668 = vadd.f32 %v1589, %v1636
        %v1669 = vadd.f32 %v1590, %v1637
        %v1670 = vadd.f32 %v1591, %v1638
        %v1671 = vadd.f32 %v1592, %v1639
        %v1672 = vadd.f32 %v1593, %v1640
        %v1673 = vadd.f32 %v1594, %v1641
        %v1674 = vadd.f32 %v1595, %v1642
        %v1675 = vadd.f32 %v1596, %v1643
        %v1676 = vadd.f32 %v1597, %v1644
        %v1677 = vld [vmem:[%s1 + $0x7] sm:$0x1]
        %1679 = vset.pattern.permute.xlu0 0
        %1680 = vperm.xlu0 %1679, %v222
        %v1681 = vpop.permute.xlu0 %1680
        %v1683 = vlaneseq
        %v1684 = vshrl.u32 %v1683, 7
        %v1685 = vsub.s32 0, %v1684
        %v1686 = vrot.slane %v1677, %v1685
        %v1687 = vmul.f32 %v247, %v1686
        %v1688 = vmul.f32 %v252, %v1686
        %v1689 = vmul.f32 %v466, %v1686
        %v1690 = vmul.f32 %v257, %v1686
        %v1691 = vmul.f32 %v262, %v1686
        %v1692 = vmul.f32 %v471, %v1686
        %v1693 = vmul.f32 %v267, %v1686
        %v1694 = vmul.f32 %v272, %v1686
        %v1695 = vmul.f32 %v476, %v1686
        %v1696 = vmul.f32 %v277, %v1686
        %v1697 = vmul.f32 %v282, %v1686
        %v1698 = vmul.f32 %v481, %v1686
        %v1699 = vmul.f32 %v287, %v1686
        %v1700 = vmul.f32 %v292, %v1686
        %v1701 = vmul.f32 %v486, %v1686
        %v1702 = vmul.f32 %v297, %v1686
        %v1703 = vmul.f32 %v302, %v1686
        %v1704 = vmul.f32 %v491, %v1686
        %v1705 = vmul.f32 %v307, %v1686
        %v1706 = vmul.f32 %v312, %v1686
        %v1707 = vmul.f32 %v496, %v1686
        %v1708 = vmul.f32 %v317, %v1686
        %v1709 = vmul.f32 %v322, %v1686
        %v1710 = vmul.f32 %v501, %v1686
        %v1711 = vmul.f32 %v327, %v1686
        %v1712 = vmul.f32 %v332, %v1686
        %v1713 = vmul.f32 %v506, %v1686
        %v1714 = vmul.f32 %v337, %v1686
        %v1715 = vmul.f32 %v342, %v1686
        %v1716 = vmul.f32 %v511, %v1686
        %v1717 = vmul.f32 %v347, %v1686
        %v1718 = vmul.f32 %v352, %v1686
        %v1719 = vmul.f32 %v516, %v1686
        %v1720 = vmul.f32 %v357, %v1686
        %v1721 = vmul.f32 %v362, %v1686
        %v1722 = vmul.f32 %v521, %v1686
        %v1723 = vmul.f32 %v367, %v1686
        %v1724 = vmul.f32 %v372, %v1686
        %v1725 = vmul.f32 %v526, %v1686
        %v1726 = vmul.f32 %v377, %v1686
        %v1727 = vmul.f32 %v382, %v1686
        %v1728 = vmul.f32 %v531, %v1686
        %v1729 = vmul.f32 %v1028, %v1686
        %v1730 = vmul.f32 %v1033, %v1686
        %v1731 = vmul.f32 %v1107, %v1686
        %v1732 = vmul.f32 %v1602, %v1686
        %v1733 = vmul.f32 %v1607, %v1686
        %v1734 = vmul.f32 %v1681, %v1686
        %v1783 = vrot.slane %v1687, 1
        %v1784 = vrot.slane %v1688, 1
        %v1785 = vsel %vm633, %v1783, %v1784
        %v1786 = vrot.slane %v1689, 1
        %v1787 = vsel %vm633, %v1784, %v1786
        %v1788 = vrot.slane %v1690, 1
        %v1789 = vrot.slane %v1691, 1
        %v1790 = vsel %vm633, %v1788, %v1789
        %v1791 = vrot.slane %v1692, 1
        %v1792 = vsel %vm633, %v1789, %v1791
        %v1793 = vrot.slane %v1693, 1
        %v1794 = vrot.slane %v1694, 1
        %v1795 = vsel %vm633, %v1793, %v1794
        %v1796 = vrot.slane %v1695, 1
        %v1797 = vsel %vm633, %v1794, %v1796
        %v1798 = vrot.slane %v1696, 1
        %v1799 = vrot.slane %v1697, 1
        %v1800 = vsel %vm633, %v1798, %v1799
        %v1801 = vrot.slane %v1698, 1
        %v1802 = vsel %vm633, %v1799, %v1801
        %v1803 = vrot.slane %v1699, 1
        %v1804 = vrot.slane %v1700, 1
        %v1805 = vsel %vm633, %v1803, %v1804
        %v1806 = vrot.slane %v1701, 1
        %v1807 = vsel %vm633, %v1804, %v1806
        %v1808 = vrot.slane %v1702, 1
        %v1809 = vrot.slane %v1703, 1
        %v1810 = vsel %vm633, %v1808, %v1809
        %v1811 = vrot.slane %v1704, 1
        %v1812 = vsel %vm633, %v1809, %v1811
        %v1813 = vrot.slane %v1705, 1
        %v1814 = vrot.slane %v1706, 1
        %v1815 = vsel %vm633, %v1813, %v1814
        %v1816 = vrot.slane %v1707, 1
        %v1817 = vsel %vm633, %v1814, %v1816
        %v1818 = vrot.slane %v1708, 1
        %v1819 = vrot.slane %v1709, 1
        %v1820 = vsel %vm633, %v1818, %v1819
        %v1821 = vrot.slane %v1710, 1
        %v1822 = vsel %vm633, %v1819, %v1821
        %v1823 = vrot.slane %v1711, 1
        %v1824 = vrot.slane %v1712, 1
        %v1825 = vsel %vm633, %v1823, %v1824
        %v1826 = vrot.slane %v1713, 1
        %v1827 = vsel %vm633, %v1824, %v1826
        %v1828 = vrot.slane %v1714, 1
        %v1829 = vrot.slane %v1715, 1
        %v1830 = vsel %vm633, %v1828, %v1829
        %v1831 = vrot.slane %v1716, 1
        %v1832 = vsel %vm633, %v1829, %v1831
        %v1833 = vrot.slane %v1717, 1
        %v1834 = vrot.slane %v1718, 1
        %v1835 = vsel %vm633, %v1833, %v1834
        %v1836 = vrot.slane %v1719, 1
        %v1837 = vsel %vm633, %v1834, %v1836
        %v1838 = vrot.slane %v1720, 1
        %v1839 = vrot.slane %v1721, 1
        %v1840 = vsel %vm633, %v1838, %v1839
        %v1841 = vrot.slane %v1722, 1
        %v1842 = vsel %vm633, %v1839, %v1841
        %v1843 = vrot.slane %v1723, 1
        %v1844 = vrot.slane %v1724, 1
        %v1845 = vsel %vm633, %v1843, %v1844
        %v1846 = vrot.slane %v1725, 1
        %v1847 = vsel %vm633, %v1844, %v1846
        %v1848 = vrot.slane %v1726, 1
        %v1849 = vrot.slane %v1727, 1
        %v1850 = vsel %vm633, %v1848, %v1849
        %v1851 = vrot.slane %v1728, 1
        %v1852 = vsel %vm633, %v1849, %v1851
        %v1853 = vrot.slane %v1729, 1
        %v1854 = vrot.slane %v1730, 1
        %v1855 = vsel %vm633, %v1853, %v1854
        %v1856 = vrot.slane %v1731, 1
        %v1857 = vsel %vm633, %v1854, %v1856
        %v1858 = vrot.slane %v1732, 1
        %v1859 = vrot.slane %v1733, 1
        %v1860 = vsel %vm633, %v1858, %v1859
        %v1861 = vrot.slane %v1734, 1
        %v1862 = vsel %vm633, %v1859, %v1861
        %v1895 = vadd.f32 %v1645, %v1785
        %v1896 = vadd.f32 %v1646, %v1787
        %v1897 = vadd.f32 %v1647, %v1790
        %v1898 = vadd.f32 %v1648, %v1792
        %v1899 = vadd.f32 %v1649, %v1795
        %v1900 = vadd.f32 %v1650, %v1797
        %v1901 = vadd.f32 %v1651, %v1800
        %v1902 = vadd.f32 %v1652, %v1802
        %v1903 = vadd.f32 %v1653, %v1805
        %v1904 = vadd.f32 %v1654, %v1807
        %v1905 = vadd.f32 %v1655, %v1810
        %v1906 = vadd.f32 %v1656, %v1812
        %v1907 = vadd.f32 %v1657, %v1815
        %v1908 = vadd.f32 %v1658, %v1817
        %v1909 = vadd.f32 %v1659, %v1820
        %v1910 = vadd.f32 %v1660, %v1822
        %v1911 = vadd.f32 %v1661, %v1825
        %v1912 = vadd.f32 %v1662, %v1827
        %v1913 = vadd.f32 %v1663, %v1830
        %v1914 = vadd.f32 %v1664, %v1832
        %v1915 = vadd.f32 %v1665, %v1835
        %v1916 = vadd.f32 %v1666, %v1837
        %v1917 = vadd.f32 %v1667, %v1840
        %v1918 = vadd.f32 %v1668, %v1842
        %v1919 = vadd.f32 %v1669, %v1845
        %v1920 = vadd.f32 %v1670, %v1847
        %v1921 = vadd.f32 %v1671, %v1850
        %v1922 = vadd.f32 %v1672, %v1852
        %v1923 = vadd.f32 %v1673, %v1855
        %v1924 = vadd.f32 %v1674, %v1857
        %v1925 = vadd.f32 %v1675, %v1860
        %v1926 = vadd.f32 %v1676, %v1862
        %v1927 = vld [vmem:[%s1 + $0x8] sm:$0x1]
        %v1928 = vlaneseq
        %v1929 = vshrl.u32 %v1928, 7
        %v1930 = vsub.s32 0, %v1929
        %v1931 = vrot.slane %v1927, %v1930
        %v1932 = vmul.f32 %v247, %v1931
        %v1933 = vmul.f32 %v252, %v1931
        %v1934 = vmul.f32 %v466, %v1931
        %v1935 = vmul.f32 %v257, %v1931
        %v1936 = vmul.f32 %v262, %v1931
        %v1937 = vmul.f32 %v471, %v1931
        %v1938 = vmul.f32 %v267, %v1931
        %v1939 = vmul.f32 %v272, %v1931
        %v1940 = vmul.f32 %v476, %v1931
        %v1941 = vmul.f32 %v277, %v1931
        %v1942 = vmul.f32 %v282, %v1931
        %v1943 = vmul.f32 %v481, %v1931
        %v1944 = vmul.f32 %v287, %v1931
        %v1945 = vmul.f32 %v292, %v1931
        %v1946 = vmul.f32 %v486, %v1931
        %v1947 = vmul.f32 %v297, %v1931
        %v1948 = vmul.f32 %v302, %v1931
        %v1949 = vmul.f32 %v491, %v1931
        %v1950 = vmul.f32 %v307, %v1931
        %v1951 = vmul.f32 %v312, %v1931
        %v1952 = vmul.f32 %v496, %v1931
        %v1953 = vmul.f32 %v317, %v1931
        %v1954 = vmul.f32 %v322, %v1931
        %v1955 = vmul.f32 %v501, %v1931
        %v1956 = vmul.f32 %v327, %v1931
        %v1957 = vmul.f32 %v332, %v1931
        %v1958 = vmul.f32 %v506, %v1931
        %v1959 = vmul.f32 %v337, %v1931
        %v1960 = vmul.f32 %v342, %v1931
        %v1961 = vmul.f32 %v511, %v1931
        %v1962 = vmul.f32 %v347, %v1931
        %v1963 = vmul.f32 %v352, %v1931
        %v1964 = vmul.f32 %v516, %v1931
        %v1965 = vmul.f32 %v357, %v1931
        %v1966 = vmul.f32 %v362, %v1931
        %v1967 = vmul.f32 %v521, %v1931
        %v1968 = vmul.f32 %v367, %v1931
        %v1969 = vmul.f32 %v372, %v1931
        %v1970 = vmul.f32 %v526, %v1931
        %v1971 = vmul.f32 %v377, %v1931
        %v1972 = vmul.f32 %v382, %v1931
        %v1973 = vmul.f32 %v531, %v1931
        %v1974 = vmul.f32 %v1028, %v1931
        %v1975 = vmul.f32 %v1033, %v1931
        %v1976 = vmul.f32 %v1107, %v1931
        %v1977 = vmul.f32 %v1602, %v1931
        %v1978 = vmul.f32 %v1607, %v1931
        %v1979 = vmul.f32 %v1681, %v1931
        %v2028 = vrot.slane %v1932, 2
        %v2029 = vrot.slane %v1933, 2
        %v2030 = vsel %vm879, %v2028, %v2029
        %v2031 = vrot.slane %v1934, 2
        %v2032 = vsel %vm879, %v2029, %v2031
        %v2033 = vrot.slane %v1935, 2
        %v2034 = vrot.slane %v1936, 2
        %v2035 = vsel %vm879, %v2033, %v2034
        %v2036 = vrot.slane %v1937, 2
        %v2037 = vsel %vm879, %v2034, %v2036
        %v2038 = vrot.slane %v1938, 2
        %v2039 = vrot.slane %v1939, 2
        %v2040 = vsel %vm879, %v2038, %v2039
        %v2041 = vrot.slane %v1940, 2
        %v2042 = vsel %vm879, %v2039, %v2041
        %v2043 = vrot.slane %v1941, 2
        %v2044 = vrot.slane %v1942, 2
        %v2045 = vsel %vm879, %v2043, %v2044
        %v2046 = vrot.slane %v1943, 2
        %v2047 = vsel %vm879, %v2044, %v2046
        %v2048 = vrot.slane %v1944, 2
        %v2049 = vrot.slane %v1945, 2
        %v2050 = vsel %vm879, %v2048, %v2049
        %v2051 = vrot.slane %v1946, 2
        %v2052 = vsel %vm879, %v2049, %v2051
        %v2053 = vrot.slane %v1947, 2
        %v2054 = vrot.slane %v1948, 2
        %v2055 = vsel %vm879, %v2053, %v2054
        %v2056 = vrot.slane %v1949, 2
        %v2057 = vsel %vm879, %v2054, %v2056
        %v2058 = vrot.slane %v1950, 2
        %v2059 = vrot.slane %v1951, 2
        %v2060 = vsel %vm879, %v2058, %v2059
        %v2061 = vrot.slane %v1952, 2
        %v2062 = vsel %vm879, %v2059, %v2061
        %v2063 = vrot.slane %v1953, 2
        %v2064 = vrot.slane %v1954, 2
        %v2065 = vsel %vm879, %v2063, %v2064
        %v2066 = vrot.slane %v1955, 2
        %v2067 = vsel %vm879, %v2064, %v2066
        %v2068 = vrot.slane %v1956, 2
        %v2069 = vrot.slane %v1957, 2
        %v2070 = vsel %vm879, %v2068, %v2069
        %v2071 = vrot.slane %v1958, 2
        %v2072 = vsel %vm879, %v2069, %v2071
        %v2073 = vrot.slane %v1959, 2
        %v2074 = vrot.slane %v1960, 2
        %v2075 = vsel %vm879, %v2073, %v2074
        %v2076 = vrot.slane %v1961, 2
        %v2077 = vsel %vm879, %v2074, %v2076
        %v2078 = vrot.slane %v1962, 2
        %v2079 = vrot.slane %v1963, 2
        %v2080 = vsel %vm879, %v2078, %v2079
        %v2081 = vrot.slane %v1964, 2
        %v2082 = vsel %vm879, %v2079, %v2081
        %v2083 = vrot.slane %v1965, 2
        %v2084 = vrot.slane %v1966, 2
        %v2085 = vsel %vm879, %v2083, %v2084
        %v2086 = vrot.slane %v1967, 2
        %v2087 = vsel %vm879, %v2084, %v2086
        %v2088 = vrot.slane %v1968, 2
        %v2089 = vrot.slane %v1969, 2
        %v2090 = vsel %vm879, %v2088, %v2089
        %v2091 = vrot.slane %v1970, 2
        %v2092 = vsel %vm879, %v2089, %v2091
        %v2093 = vrot.slane %v1971, 2
        %v2094 = vrot.slane %v1972, 2
        %v2095 = vsel %vm879, %v2093, %v2094
        %v2096 = vrot.slane %v1973, 2
        %v2097 = vsel %vm879, %v2094, %v2096
        %v2098 = vrot.slane %v1974, 2
        %v2099 = vrot.slane %v1975, 2
        %v2100 = vsel %vm879, %v2098, %v2099
        %v2101 = vrot.slane %v1976, 2
        %v2102 = vsel %vm879, %v2099, %v2101
        %v2103 = vrot.slane %v1977, 2
        %v2104 = vrot.slane %v1978, 2
        %v2105 = vsel %vm879, %v2103, %v2104
        %v2106 = vrot.slane %v1979, 2
        %v2107 = vsel %vm879, %v2104, %v2106
        %v2140 = vadd.f32 %v1895, %v2030
        %v2141 = vadd.f32 %v1896, %v2032
        %v2142 = vadd.f32 %v1897, %v2035
        %v2143 = vadd.f32 %v1898, %v2037
        %v2144 = vadd.f32 %v1899, %v2040
        %v2145 = vadd.f32 %v1900, %v2042
        %v2146 = vadd.f32 %v1901, %v2045
        %v2147 = vadd.f32 %v1902, %v2047
        %v2148 = vadd.f32 %v1903, %v2050
        %v2149 = vadd.f32 %v1904, %v2052
        %v2150 = vadd.f32 %v1905, %v2055
        %v2151 = vadd.f32 %v1906, %v2057
        %v2152 = vadd.f32 %v1907, %v2060
        %v2153 = vadd.f32 %v1908, %v2062
        %v2154 = vadd.f32 %v1909, %v2065
        %v2155 = vadd.f32 %v1910, %v2067
        %v2156 = vadd.f32 %v1911, %v2070
        %v2157 = vadd.f32 %v1912, %v2072
        %v2158 = vadd.f32 %v1913, %v2075
        %v2159 = vadd.f32 %v1914, %v2077
        %v2160 = vadd.f32 %v1915, %v2080
        %v2161 = vadd.f32 %v1916, %v2082
        %v2162 = vadd.f32 %v1917, %v2085
        %v2163 = vadd.f32 %v1918, %v2087
        %v2164 = vadd.f32 %v1919, %v2090
        %v2165 = vadd.f32 %v1920, %v2092
        %v2166 = vadd.f32 %v1921, %v2095
        %v2167 = vadd.f32 %v1922, %v2097
        %v2168 = vadd.f32 %v1923, %v2100
        %v2169 = vadd.f32 %v1924, %v2102
        %v2170 = vadd.f32 %v1925, %v2105
        %v2171 = vadd.f32 %v1926, %v2107
        %v2172 = vld [vmem:[%s2] sm:$0x1]
        %v2174 = vlaneseq
        %v2175 = vshrl.u32 %v2174, 7
        %v2176 = vsub.s32 0, %v2175
        %v2177 = vrot.slane %v2172, %v2176
        %v2179 = vadd.f32 %v2140, %v2177
        %v2180 = vadd.f32 %v2141, %v2177
        %v2181 = vadd.f32 %v2142, %v2177
        %v2182 = vadd.f32 %v2143, %v2177
        %v2183 = vadd.f32 %v2144, %v2177
        %v2184 = vadd.f32 %v2145, %v2177
        %v2185 = vadd.f32 %v2146, %v2177
        %v2186 = vadd.f32 %v2147, %v2177
        %v2187 = vadd.f32 %v2148, %v2177
        %v2188 = vadd.f32 %v2149, %v2177
        %v2189 = vadd.f32 %v2150, %v2177
        %v2190 = vadd.f32 %v2151, %v2177
        %v2191 = vadd.f32 %v2152, %v2177
        %v2192 = vadd.f32 %v2153, %v2177
        %v2193 = vadd.f32 %v2154, %v2177
        %v2194 = vadd.f32 %v2155, %v2177
        %v2195 = vadd.f32 %v2156, %v2177
        %v2196 = vadd.f32 %v2157, %v2177
        %v2197 = vadd.f32 %v2158, %v2177
        %v2198 = vadd.f32 %v2159, %v2177
        %v2199 = vadd.f32 %v2160, %v2177
        %v2200 = vadd.f32 %v2161, %v2177
        %v2201 = vadd.f32 %v2162, %v2177
        %v2202 = vadd.f32 %v2163, %v2177
        %v2203 = vadd.f32 %v2164, %v2177
        %v2204 = vadd.f32 %v2165, %v2177
        %v2205 = vadd.f32 %v2166, %v2177
        %v2206 = vadd.f32 %v2167, %v2177
        %v2207 = vadd.f32 %v2168, %v2177
        %v2208 = vadd.f32 %v2169, %v2177
        %v2209 = vadd.f32 %v2170, %v2177
        %v2210 = vadd.f32 %v2171, %v2177
        %vm2211 = vcmp.ge.f32.partialorder %v2179, 0.0
        %vm2212 = vcmp.ge.f32.partialorder %v2180, 0.0
        %vm2213 = vcmp.ge.f32.partialorder %v2181, 0.0
        %vm2214 = vcmp.ge.f32.partialorder %v2182, 0.0
        %vm2215 = vcmp.ge.f32.partialorder %v2183, 0.0
        %vm2216 = vcmp.ge.f32.partialorder %v2184, 0.0
        %vm2217 = vcmp.ge.f32.partialorder %v2185, 0.0
        %vm2218 = vcmp.ge.f32.partialorder %v2186, 0.0
        %vm2219 = vcmp.ge.f32.partialorder %v2187, 0.0
        %vm2220 = vcmp.ge.f32.partialorder %v2188, 0.0
        %vm2221 = vcmp.ge.f32.partialorder %v2189, 0.0
        %vm2222 = vcmp.ge.f32.partialorder %v2190, 0.0
        %vm2223 = vcmp.ge.f32.partialorder %v2191, 0.0
        %vm2224 = vcmp.ge.f32.partialorder %v2192, 0.0
        %vm2225 = vcmp.ge.f32.partialorder %v2193, 0.0
        %vm2226 = vcmp.ge.f32.partialorder %v2194, 0.0
        %vm2227 = vcmp.ge.f32.partialorder %v2195, 0.0
        %vm2228 = vcmp.ge.f32.partialorder %v2196, 0.0
        %vm2229 = vcmp.ge.f32.partialorder %v2197, 0.0
        %vm2230 = vcmp.ge.f32.partialorder %v2198, 0.0
        %vm2231 = vcmp.ge.f32.partialorder %v2199, 0.0
        %vm2232 = vcmp.ge.f32.partialorder %v2200, 0.0
        %vm2233 = vcmp.ge.f32.partialorder %v2201, 0.0
        %vm2234 = vcmp.ge.f32.partialorder %v2202, 0.0
        %vm2235 = vcmp.ge.f32.partialorder %v2203, 0.0
        %vm2236 = vcmp.ge.f32.partialorder %v2204, 0.0
        %vm2237 = vcmp.ge.f32.partialorder %v2205, 0.0
        %vm2238 = vcmp.ge.f32.partialorder %v2206, 0.0
        %vm2239 = vcmp.ge.f32.partialorder %v2207, 0.0
        %vm2240 = vcmp.ge.f32.partialorder %v2208, 0.0
        %vm2241 = vcmp.ge.f32.partialorder %v2209, 0.0
        %vm2242 = vcmp.ge.f32.partialorder %v2210, 0.0
        %v2243 = vmul.f32 %v2179, 0.01
        %v2244 = vmul.f32 %v2180, 0.01
        %v2245 = vmul.f32 %v2181, 0.01
        %v2246 = vmul.f32 %v2182, 0.01
        %v2247 = vmul.f32 %v2183, 0.01
        %v2248 = vmul.f32 %v2184, 0.01
        %v2249 = vmul.f32 %v2185, 0.01
        %v2250 = vmul.f32 %v2186, 0.01
        %v2251 = vmul.f32 %v2187, 0.01
        %v2252 = vmul.f32 %v2188, 0.01
        %v2253 = vmul.f32 %v2189, 0.01
        %v2254 = vmul.f32 %v2190, 0.01
        %v2255 = vmul.f32 %v2191, 0.01
        %v2256 = vmul.f32 %v2192, 0.01
        %v2257 = vmul.f32 %v2193, 0.01
        %v2258 = vmul.f32 %v2194, 0.01
        %v2259 = vmul.f32 %v2195, 0.01
        %v2260 = vmul.f32 %v2196, 0.01
        %v2261 = vmul.f32 %v2197, 0.01
        %v2262 = vmul.f32 %v2198, 0.01
        %v2263 = vmul.f32 %v2199, 0.01
        %v2264 = vmul.f32 %v2200, 0.01
        %v2265 = vmul.f32 %v2201, 0.01
        %v2266 = vmul.f32 %v2202, 0.01
        %v2267 = vmul.f32 %v2203, 0.01
        %v2268 = vmul.f32 %v2204, 0.01
        %v2269 = vmul.f32 %v2205, 0.01
        %v2270 = vmul.f32 %v2206, 0.01
        %v2271 = vmul.f32 %v2207, 0.01
        %v2272 = vmul.f32 %v2208, 0.01
        %v2273 = vmul.f32 %v2209, 0.01
        %v2274 = vmul.f32 %v2210, 0.01
        %v2275 = vsel %vm2211, %v2179, %v2243
        %v2276 = vsel %vm2212, %v2180, %v2244
        %v2277 = vsel %vm2213, %v2181, %v2245
        %v2278 = vsel %vm2214, %v2182, %v2246
        %v2279 = vsel %vm2215, %v2183, %v2247
        %v2280 = vsel %vm2216, %v2184, %v2248
        %v2281 = vsel %vm2217, %v2185, %v2249
        %v2282 = vsel %vm2218, %v2186, %v2250
        %v2283 = vsel %vm2219, %v2187, %v2251
        %v2284 = vsel %vm2220, %v2188, %v2252
        %v2285 = vsel %vm2221, %v2189, %v2253
        %v2286 = vsel %vm2222, %v2190, %v2254
        %v2287 = vsel %vm2223, %v2191, %v2255
        %v2288 = vsel %vm2224, %v2192, %v2256
        %v2289 = vsel %vm2225, %v2193, %v2257
        %v2290 = vsel %vm2226, %v2194, %v2258
        %v2291 = vsel %vm2227, %v2195, %v2259
        %v2292 = vsel %vm2228, %v2196, %v2260
        %v2293 = vsel %vm2229, %v2197, %v2261
        %v2294 = vsel %vm2230, %v2198, %v2262
        %v2295 = vsel %vm2231, %v2199, %v2263
        %v2296 = vsel %vm2232, %v2200, %v2264
        %v2297 = vsel %vm2233, %v2201, %v2265
        %v2298 = vsel %vm2234, %v2202, %v2266
        %v2299 = vsel %vm2235, %v2203, %v2267
        %v2300 = vsel %vm2236, %v2204, %v2268
        %v2301 = vsel %vm2237, %v2205, %v2269
        %v2302 = vsel %vm2238, %v2206, %v2270
        %v2303 = vsel %vm2239, %v2207, %v2271
        %v2304 = vsel %vm2240, %v2208, %v2272
        %v2305 = vsel %vm2241, %v2209, %v2273
        %v2306 = vsel %vm2242, %v2210, %v2274
        %vm2307 = vcmask 261120
        %v2308 = vsel %vm2307, %v2275, 0.0
        %v2309 = vsel %vm2307, %v2277, 0.0
        %v2310 = vadd.f32 %v2308, %v2309
        %v2311 = vsel %vm2307, %v2279, 0.0
        %v2312 = vadd.f32 %v2310, %v2311
        %v2313 = vsel %vm2307, %v2281, 0.0
        %v2314 = vadd.f32 %v2312, %v2313
        %v2315 = vsel %vm2307, %v2283, 0.0
        %v2316 = vadd.f32 %v2314, %v2315
        %v2317 = vsel %vm2307, %v2285, 0.0
        %v2318 = vadd.f32 %v2316, %v2317
        %v2319 = vsel %vm2307, %v2287, 0.0
        %v2320 = vadd.f32 %v2318, %v2319
        %v2321 = vsel %vm2307, %v2289, 0.0
        %v2322 = vadd.f32 %v2320, %v2321
        %v2323 = vsel %vm2307, %v2291, 0.0
        %v2324 = vadd.f32 %v2322, %v2323
        %v2325 = vsel %vm2307, %v2293, 0.0
        %v2326 = vadd.f32 %v2324, %v2325
        %v2327 = vsel %vm2307, %v2295, 0.0
        %v2328 = vadd.f32 %v2326, %v2327
        %v2329 = vsel %vm2307, %v2297, 0.0
        %v2330 = vadd.f32 %v2328, %v2329
        %v2331 = vsel %vm2307, %v2299, 0.0
        %v2332 = vadd.f32 %v2330, %v2331
        %v2333 = vsel %vm2307, %v2301, 0.0
        %v2334 = vadd.f32 %v2332, %v2333
        %v2335 = vsel %vm2307, %v2303, 0.0
        %v2336 = vadd.f32 %v2334, %v2335
        %v2337 = vsel %vm2307, %v2305, 0.0
        %v2338 = vadd.f32 %v2336, %v2337
        %v2339 = vsel %vm2307, %v2276, 0.0
        %v2340 = vsel %vm2307, %v2278, 0.0
        %v2341 = vadd.f32 %v2339, %v2340
        %v2342 = vsel %vm2307, %v2280, 0.0
        %v2343 = vadd.f32 %v2341, %v2342
        %v2344 = vsel %vm2307, %v2282, 0.0
        %v2345 = vadd.f32 %v2343, %v2344
        %v2346 = vsel %vm2307, %v2284, 0.0
        %v2347 = vadd.f32 %v2345, %v2346
        %v2348 = vsel %vm2307, %v2286, 0.0
        %v2349 = vadd.f32 %v2347, %v2348
        %v2350 = vsel %vm2307, %v2288, 0.0
        %v2351 = vadd.f32 %v2349, %v2350
        %v2352 = vsel %vm2307, %v2290, 0.0
        %v2353 = vadd.f32 %v2351, %v2352
        %v2354 = vsel %vm2307, %v2292, 0.0
        %v2355 = vadd.f32 %v2353, %v2354
        %v2356 = vsel %vm2307, %v2294, 0.0
        %v2357 = vadd.f32 %v2355, %v2356
        %v2358 = vsel %vm2307, %v2296, 0.0
        %v2359 = vadd.f32 %v2357, %v2358
        %v2360 = vsel %vm2307, %v2298, 0.0
        %v2361 = vadd.f32 %v2359, %v2360
        %v2362 = vsel %vm2307, %v2300, 0.0
        %v2363 = vadd.f32 %v2361, %v2362
        %v2364 = vsel %vm2307, %v2302, 0.0
        %v2365 = vadd.f32 %v2363, %v2364
        %v2366 = vsel %vm2307, %v2304, 0.0
        %v2367 = vadd.f32 %v2365, %v2366
        %v2368 = vsel %vm2307, %v2306, 0.0
        %v2369 = vadd.f32 %v2367, %v2368
        %v2370 = vrcp.pop 16.0
        %v2371 = vmul.f32 %v2338, %v2370
        %v2372 = vmul.f32 %v2369, %v2370
        %v2373 = vpack.c.bf16 %v2372, %v2371
        %v2375 = vunpack.c.l.b16 %v2373
        %v2376 = vunpack.c.h.b16 %v2373
        %v2377 = vpack.c.b16 %v2375, %v2375
        %v2378 = vpack.c.b16 %v2376, %v2376
        %vm2381 = vcmask 257024
        %2382 = vst.msk [vmem:[%s163] sm:$0xf] %vm2381, %v2377
        %2383 = vst.msk [vmem:[%s163 + $0x4] sm:$0xf] %vm2381, %v2378
        %s2384 = sand.u32 %s93, 1
        %s2385 = scalar_lea.sflag [#allocation3], %s2384
        %s2386 = sand.u32 %s93, 1
        %s2387 = smul.addr %s2386, 8
        %s2388 = scalar_lea.vmem [#allocation2], %s2387
        // Predicated region
        $region33: #{tpu_custom_call.1} parent=31 // pred_check
          %p2389 = pneg %p103
        $region34: #{tpu_custom_call.1} parent=31 // pred_check_branch
          %2391 = sbr.rel (%p2389) target = $region36
        $region35: #{tpu_custom_call.1} parent=31 // pred_region
          %s2393 = ssub.s32 128, 128
          %2394 = vsyncadd %s2385, %s2393
          %s2395 = smul.addr %s17, 2
          %s2396 = smul.addr %s2395, 64
          %s2397 = scalar_lea.hbm %s3, %s2396
          %s2398 = sshll.u32 %s2388, 4
          %s2399 = int_to_ptr.vmem [resolvable:$true] %s2398
          %2404 = dma.vmem_to_hbm [thread:$0]  %s2399, 128, %s2397, %s2385, 64, 64, 4
        $region36: #{tpu_custom_call.1} parent=31 // pred_fallthru
          _
      $region32: #{tpu_custom_call.1} parent=5 // pred_fallthru
        _
      %p2405 = scmp.le.s32.totalorder 2, %s12
      // Predicated region
      $region37: #{tpu_custom_call.1} parent=5 // pred_check
        %p2406 = pneg %p2405
      $region38: #{tpu_custom_call.1} parent=5 // pred_check_branch
        %2408 = sbr.rel (%p2406) target = $region40
      $region39: #{tpu_custom_call.1} parent=5 // pred_region
        %s2409 = ssub.s32 %s12, 2
        // Predicated region
        $region41: #{tpu_custom_call.1} parent=39 // pred_check
          %p2410 = pneg %p109
        $region42: #{tpu_custom_call.1} parent=39 // pred_check_branch
          %2412 = sbr.rel (%p2410) target = $region44
        $region43: #{tpu_custom_call.1} parent=39 // pred_region
          %s2413 = sand.u32 %s94, 1
          %s2414 = scalar_lea.sflag [#allocation3], %s2413
          %s2415 = sand.u32 %s94, 1
          %s2416 = smul.addr %s2415, 8
          %s2417 = scalar_lea.vmem [#allocation2], %s2416
          %2418 = dma.done %s2414, 128
        $region44: #{tpu_custom_call.1} parent=39 // pred_fallthru
          _
      $region40: #{tpu_custom_call.1} parent=5 // pred_fallthru
        _
    $region6: #{tpu_custom_call.1} parent=1 // loop_footer
      %s16 = sadd.s32 1, %s12
    $region7: #{tpu_custom_call.1} parent=1 // loop_footer_branch
      %11 = sbr.rel target = $region3
    $region8: #{tpu_custom_call.1} parent=1 // loop_exit
      _
    %2419 = vsyncpa [#allocation3], 1
    %s2420 = scalar_lea.sflag [#allocation3], 1
    %2421 = vsyncpa %s2420, 1

</llo_original>
